<compile_context>
chip_gen: v6e
topology: v6e:2x2x1
jax: 0.10.0
libtpu: 0.0.40
codegen_flags: <defaults>
</compile_context>

<pallas_src>
import functools

import jax
import jax.numpy as jnp
from jax.experimental import pallas as pl
from jax.experimental.pallas import tpu as pltpu


def _upsample_times(lr, x, r, out_dtype):
    """lr: (B, H, W); x: (B, ...) holding H*r*W*r elements per slab.

    Returns x * nearest_upsample(lr, r) with x's trailing shape. The repeat is
    a broadcast over inserted singleton dims followed by a flatten to x.shape.
    """
    B, H, W = lr.shape
    up = jnp.broadcast_to(lr[:, :, None, :, None], (B, H, r, W, r))
    up = up.reshape(x.shape)
    return (x.astype(jnp.float32) * up.astype(jnp.float32)).astype(out_dtype)


def _recover_kernel(x_ref, lr_ref, o_ref, *, r):
    # x_ref / o_ref: (B, Hr*Wr) lane-dense (preferred) or (B, Hr, Wr) fallback.
    # lr_ref       : (B, H, W)
    o_ref[...] = _upsample_times(lr_ref[...], x_ref[...], r, o_ref.dtype)


def _pick_block_rows(nc, row_bytes, target_bytes=2 * 1024 * 1024):
    """Largest sublane-aligned (multiple-of-8) divisor of nc whose x block is
    <= ~target_bytes; falls back to the whole array for small problems."""
    cap = max(1, target_bytes // max(row_bytes, 1))
    best = None
    b = 8
    while b <= min(cap, nc):
        if nc % b == 0:
            best = b
        b += 8
    if best is not None and nc // best >= 2:
        return best
    return nc  # tiny problem (or no aligned divisor): single block


def _recover_call(x2, lr2, r, *, flat):
    # x2: (NC, Hr*Wr) if flat else (NC, Hr, Wr); lr2: (NC, H, W)
    NC = x2.shape[0]
    H, W = lr2.shape[1], lr2.shape[2]
    Hr, Wr = H * r, W * r
    row_elems = Hr * Wr
    itemsize = jnp.dtype(x2.dtype).itemsize

    B = _pick_block_rows(NC, row_elems * itemsize)
    grid = (NC // B,)

    if flat:
        x_spec = pl.BlockSpec((B, row_elems), lambda i: (i, 0))
        o_spec = pl.BlockSpec((B, row_elems), lambda i: (i, 0))
    else:
        x_spec = pl.BlockSpec((B, Hr, Wr), lambda i: (i, 0, 0))
        o_spec = pl.BlockSpec((B, Hr, Wr), lambda i: (i, 0, 0))
    lr_spec = pl.BlockSpec((B, H, W), lambda i: (i, 0, 0))

    # Double-buffered x-in, lr-in and out blocks plus slack for the in-kernel
    # upsample relayout; keep well inside v7x's 64 MiB physical VMEM.
    blk_bytes = B * (2 * row_elems + H * W) * itemsize
    vmem_limit = min(max(4 * blk_bytes, 32 * 1024 * 1024), 48 * 1024 * 1024)

    return pl.pallas_call(
        functools.partial(_recover_kernel, r=r),
        out_shape=jax.ShapeDtypeStruct(x2.shape, x2.dtype),
        grid_spec=pltpu.PrefetchScalarGridSpec(
            num_scalar_prefetch=0,
            grid=grid,
            in_specs=[x_spec, lr_spec],
            out_specs=o_spec,
        ),
        compiler_params=pltpu.CompilerParams(
            dimension_semantics=("parallel",),
            vmem_limit_bytes=vmem_limit,
        ),
        input_output_aliases={0: 0},  # out aliases x
        cost_estimate=pl.CostEstimate(
            flops=NC * row_elems,
            transcendentals=0,
            bytes_accessed=NC * (2 * row_elems + H * W) * itemsize,
        ),
    )(x2, lr2)


def recover_from_density(x, lr_img, upscale_factor):
    """x: (N, C, H*r, W*r), lr_img: (N, C, H, W) -> (N, C, H*r, W*r)."""
    N, C, Hr, Wr = x.shape
    Nl, Cl, H, W = lr_img.shape
    r = int(upscale_factor)
    assert (N, C) == (Nl, Cl) and Hr == H * r and Wr == W * r

    NC = N * C
    lr2 = lr_img.reshape(NC, H, W)
    try:
        # Preferred: lane-dense flattened layout (minor axis = Hr*Wr).
        out = _recover_call(x.reshape(NC, Hr * Wr), lr2, r, flat=True)
    except Exception:
        # Fallback: per-slab (B, Hr, Wr) layout (lane-sparse but always lowers).
        out = _recover_call(x.reshape(NC, Hr, Wr), lr2, r, flat=False)
    return out.reshape(N, C, Hr, Wr)


if __name__ == "__main__":
    upscale_factor = 2
    N, C, H, W = 2, 4, 8, 8
    Hr, Wr = H * upscale_factor, W * upscale_factor

    key = jax.random.PRNGKey(0)
    kx, kl = jax.random.split(key)
    x = jax.random.normal(kx, (N, C, Hr, Wr), dtype=jnp.float32)
    lr_img = jax.random.normal(kl, (N, C, H, W), dtype=jnp.float32)

    # Pure-JAX reference: nearest upsample then multiply (computed first).
    up_ref = jnp.repeat(jnp.repeat(lr_img, upscale_factor, axis=2),
                        upscale_factor, axis=3)
    ref = x * up_ref

    out = recover_from_density(x, lr_img, upscale_factor)
    out = jax.block_until_ready(out)

    assert out.shape == (N, C, Hr, Wr)
    assert jnp.allclose(out, ref, atol=1e-6, rtol=1e-6)

    print("KERNEL_OK")
</pallas_src>

<mosaic_0001>
module attributes {stable_mosaic.version = 11 : i64} {
  func.func @_recover_kernel(%arg0: i32, %arg1: memref<8x256xf32, #tpu.memory_space<vmem>>, %arg2: memref<8x8x8xf32, #tpu.memory_space<vmem>>, %arg3: memref<8x256xf32, #tpu.memory_space<vmem>>) attributes {dimension_semantics = [#tpu.dimension_semantics<parallel>], iteration_bounds = array<i64: 1>, scalar_prefetch = 0 : i64, scratch_operands = 0 : i64, tpu.core_type = #tpu.core_type<tc>, window_params = [{transform_indices = @transform_0, window_bounds = array<i64: 8, 256>}, {transform_indices = @transform_1, window_bounds = array<i64: 8, 8, 8>}, {transform_indices = @transform_2, window_bounds = array<i64: 8, 256>}]} {
    %c0 = arith.constant 0 : index
    %c0_0 = arith.constant 0 : index
    %c0_1 = arith.constant 0 : index
    %0 = vector.load %arg2[%c0, %c0_0, %c0_1] : memref<8x8x8xf32, #tpu.memory_space<vmem>>, vector<8x8x8xf32>
    %c0_2 = arith.constant 0 : index
    %c0_3 = arith.constant 0 : index
    %1 = vector.load %arg1[%c0_2, %c0_3] : memref<8x256xf32, #tpu.memory_space<vmem>>, vector<8x256xf32>
    %2 = vector.shape_cast %0 : vector<8x8x8xf32> to vector<8x8x1x8x1xf32>
    %3 = vector.shape_cast %2 : vector<8x8x1x8x1xf32> to vector<8x8x1x8x1xf32>
    %4 = vector.broadcast %3 : vector<8x8x1x8x1xf32> to vector<8x8x2x8x2xf32>
    %5 = vector.shape_cast %4 : vector<8x8x2x8x2xf32> to vector<8x256xf32>
    %6 = arith.mulf %1, %5 : vector<8x256xf32>
    %c0_4 = arith.constant 0 : index
    %c0_5 = arith.constant 0 : index
    %7 = vector.load %arg3[%c0_4, %c0_5] : memref<8x256xf32, #tpu.memory_space<vmem>>, vector<8x256xf32>
    tpu.vector_store %arg3[%c0_4, %c0_5], %6 {strides = array<i32>} : memref<8x256xf32, #tpu.memory_space<vmem>>, vector<8x256xf32>,
    return
  }
  func.func @transform_0(%arg0: i32) -> (i32, i32) {
    %c0_i32 = arith.constant 0 : i32
    %c0_i32_0 = arith.constant 0 : i32
    return %arg0, %c0_i32 : i32, i32
  }
  func.func @transform_1(%arg0: i32) -> (i32, i32, i32) {
    %c0_i32 = arith.constant 0 : i32
    %c0_i32_0 = arith.constant 0 : i32
    %c0_i32_1 = arith.constant 0 : i32
    return %arg0, %c0_i32, %c0_i32_0 : i32, i32, i32
  }
  func.func @transform_2(%arg0: i32) -> (i32, i32) {
    %c0_i32 = arith.constant 0 : i32
    %c0_i32_0 = arith.constant 0 : i32
    return %arg0, %c0_i32 : i32, i32
  }
}

module attributes {stable_mosaic.version = 11 : i64} {
  func.func @_recover_kernel(%arg0: i32, %arg1: memref<8x16x16xf32, #tpu.memory_space<vmem>>, %arg2: memref<8x8x8xf32, #tpu.memory_space<vmem>>, %arg3: memref<8x16x16xf32, #tpu.memory_space<vmem>>) attributes {dimension_semantics = [#tpu.dimension_semantics<parallel>], iteration_bounds = array<i64: 1>, scalar_prefetch = 0 : i64, scratch_operands = 0 : i64, tpu.core_type = #tpu.core_type<tc>, window_params = [{transform_indices = @transform_0, window_bounds = array<i64: 8, 16, 16>}, {transform_indices = @transform_1, window_bounds = array<i64: 8, 8, 8>}, {transform_indices = @transform_2, window_bounds = array<i64: 8, 16, 16>}]} {
    %c0 = arith.constant 0 : index
    %c0_0 = arith.constant 0 : index
    %c0_1 = arith.constant 0 : index
    %0 = vector.load %arg2[%c0, %c0_0, %c0_1] : memref<8x8x8xf32, #tpu.memory_space<vmem>>, vector<8x8x8xf32>
    %c0_2 = arith.constant 0 : index
    %c0_3 = arith.constant 0 : index
    %c0_4 = arith.constant 0 : index
    %1 = vector.load %arg1[%c0_2, %c0_3, %c0_4] : memref<8x16x16xf32, #tpu.memory_space<vmem>>, vector<8x16x16xf32>
    %2 = vector.shape_cast %0 : vector<8x8x8xf32> to vector<8x8x1x8x1xf32>
    %3 = vector.shape_cast %2 : vector<8x8x1x8x1xf32> to vector<8x8x1x8x1xf32>
    %4 = vector.broadcast %3 : vector<8x8x1x8x1xf32> to vector<8x8x2x8x2xf32>
    %5 = vector.shape_cast %4 : vector<8x8x2x8x2xf32> to vector<8x16x16xf32>
    %6 = arith.mulf %1, %5 : vector<8x16x16xf32>
    %c0_5 = arith.constant 0 : index
    %c0_6 = arith.constant 0 : index
    %c0_7 = arith.constant 0 : index
    %7 = vector.load %arg3[%c0_5, %c0_6, %c0_7] : memref<8x16x16xf32, #tpu.memory_space<vmem>>, vector<8x16x16xf32>
    tpu.vector_store %arg3[%c0_5, %c0_6, %c0_7], %6 {strides = array<i32>} : memref<8x16x16xf32, #tpu.memory_space<vmem>>, vector<8x16x16xf32>,
    return
  }
  func.func @transform_0(%arg0: i32) -> (i32, i32, i32) {
    %c0_i32 = arith.constant 0 : i32
    %c0_i32_0 = arith.constant 0 : i32
    %c0_i32_1 = arith.constant 0 : i32
    return %arg0, %c0_i32, %c0_i32_0 : i32, i32, i32
  }
  func.func @transform_1(%arg0: i32) -> (i32, i32, i32) {
    %c0_i32 = arith.constant 0 : i32
    %c0_i32_0 = arith.constant 0 : i32
    %c0_i32_1 = arith.constant 0 : i32
    return %arg0, %c0_i32, %c0_i32_0 : i32, i32, i32
  }
  func.func @transform_2(%arg0: i32) -> (i32, i32, i32) {
    %c0_i32 = arith.constant 0 : i32
    %c0_i32_0 = arith.constant 0 : i32
    %c0_i32_1 = arith.constant 0 : i32
    return %arg0, %c0_i32, %c0_i32_0 : i32, i32, i32
  }
}

</mosaic_0001>

<llo_original>
// kernel: tpu_custom_call.1
$region0: #{tpu_custom_call.1}
  #allocation0 [shape = 'u32[]', space=smem, size = 0x4, offset = 0x4, fixed_abs, tag = 'smem constant byte address 0x4 - core index']
  #allocation1 [shape = 'u32[144,128]{1,0:T(1,128)}', space=vmem, size = 0x12000, scoped, tag = 'internal scratch']
  %s0 = inlined_call_operand.hbm [shape: f32[8,16,16], index: 0, kind: input, shape index: {}, may-alias: {0,2}]
  %s1 = inlined_call_operand.vmem [shape: f32[8,8,8], index: 1, kind: input, shape index: {}]
  %s2 = inlined_call_operand.hbm [shape: f32[8,16,16], index: 2, kind: output, shape index: {}, may-alias: {0,2}]
  %s3 = sld [smem:[#allocation0]]
  $region22: #{tpu_custom_call.1} parent=0
    _
  %s5 = ssub.s32 1, %s3
  %s6 = scalar_select 0, %s5, %s3
  $region1: #{tpu_custom_call.1} parent=0
    #allocation2 [shape = 'u8[65536]{0}', space=vmem, size = 0x10000, scoped, tag = 'input window, operand 0, single buffered']
    #allocation3 [shape = 's32[1]{0}', space=sflag, size = 0x4, scoped, tag = 'scoped memory for tpu_custom_call.1']
    #allocation4 [shape = 's32[1]{0}', space=sflag, size = 0x4, scoped, tag = 'scoped memory for tpu_custom_call.1']
    #allocation5 [shape = 'u8[65536]{0}', space=vmem, size = 0x10000, scoped, tag = 'output window, operand 0, single buffered']
    %7 = vsyncpa [#allocation3], 0
    %8 = vsyncpa [#allocation4], 0
    // Predicated region
    $region2: #{tpu_custom_call.1} parent=1 // pred_check
      _
    $region3: #{tpu_custom_call.1} parent=1 // pred_check_branch
      %10 = sbr.rel (0) target = $region5
    $region4: #{tpu_custom_call.1} parent=1 // pred_region
      %s12 = ssub.s32 2048, 2048
      %13 = vsyncadd [#allocation3], %s12
      %s14 = sshll.u32 [#allocation2], 4
      %s15 = int_to_ptr.vmem [resolvable:$true] %s14
      %20 = dma.hbm_to_vmem [thread:$0]  %s0, 2048, %s15, [#allocation3], 128, 128, 8
    $region5: #{tpu_custom_call.1} parent=1 // pred_fallthru
      _
    // Predicated region
    $region6: #{tpu_custom_call.1} parent=1 // pred_check
      _
    $region7: #{tpu_custom_call.1} parent=1 // pred_check_branch
      %22 = sbr.rel (0) target = $region9
    $region8: #{tpu_custom_call.1} parent=1 // pred_region
      _
    $region9: #{tpu_custom_call.1} parent=1 // pred_fallthru
      _
    // Predicated region
    $region10: #{tpu_custom_call.1} parent=1 // pred_check
      _
    $region11: #{tpu_custom_call.1} parent=1 // pred_check_branch
      %24 = sbr.rel (0) target = $region13
    $region12: #{tpu_custom_call.1} parent=1 // pred_region
      %25 = dma.done [#allocation3], 2048
    $region13: #{tpu_custom_call.1} parent=1 // pred_fallthru
      _
    %v26 = vld [vmem:[%s1] sm:$0xff]
    %v27 = vld [vmem:[%s1 + $0x8] sm:$0xff]
    %v28 = vld [vmem:[%s1 + $0x10] sm:$0xff]
    %v29 = vld [vmem:[%s1 + $0x18] sm:$0xff]
    %v30 = vld [vmem:[%s1 + $0x20] sm:$0xff]
    %v31 = vld [vmem:[%s1 + $0x28] sm:$0xff]
    %v32 = vld [vmem:[%s1 + $0x30] sm:$0xff]
    %v33 = vld [vmem:[%s1 + $0x38] sm:$0xff]
    %v34 = vld [vmem:[#allocation2] sm:$0xff]
    %v35 = vld [vmem:[#allocation2 + $0x8] sm:$0xff]
    %v36 = vld [vmem:[#allocation2 + $0x10] sm:$0xff]
    %v37 = vld [vmem:[#allocation2 + $0x18] sm:$0xff]
    %v38 = vld [vmem:[#allocation2 + $0x20] sm:$0xff]
    %v39 = vld [vmem:[#allocation2 + $0x28] sm:$0xff]
    %v40 = vld [vmem:[#allocation2 + $0x30] sm:$0xff]
    %v41 = vld [vmem:[#allocation2 + $0x38] sm:$0xff]
    %v42 = vld [vmem:[#allocation2 + $0x40] sm:$0xff]
    %v43 = vld [vmem:[#allocation2 + $0x48] sm:$0xff]
    %v44 = vld [vmem:[#allocation2 + $0x50] sm:$0xff]
    %v45 = vld [vmem:[#allocation2 + $0x58] sm:$0xff]
    %v46 = vld [vmem:[#allocation2 + $0x60] sm:$0xff]
    %v47 = vld [vmem:[#allocation2 + $0x68] sm:$0xff]
    %v48 = vld [vmem:[#allocation2 + $0x70] sm:$0xff]
    %v49 = vld [vmem:[#allocation2 + $0x78] sm:$0xff]
    %v50 = vlaneseq
    %v51 = vshrl.u32 %v50, 7
    %v52 = vsub.s32 0, %v51
    %v53 = vrot.slane %v26, %v52
    %55 = vbcast.lane.b32.xlu0 %v53, 256
    %v56 = vpop.permute.xlu0 %55
    %v57 = vlaneseq
    %v58 = vshrl.u32 %v57, 7
    %v59 = vsub.s32 1, %v58
    %v60 = vrot.slane %v26, %v59
    %62 = vbcast.lane.b32.xlu0 %v60, 256
    %v63 = vpop.permute.xlu0 %62
    %v64 = vlaneseq
    %v65 = vshrl.u32 %v64, 7
    %v66 = vsub.s32 2, %v65
    %v67 = vrot.slane %v26, %v66
    %69 = vbcast.lane.b32.xlu0 %v67, 256
    %v70 = vpop.permute.xlu0 %69
    %v71 = vlaneseq
    %v72 = vshrl.u32 %v71, 7
    %v73 = vsub.s32 3, %v72
    %v74 = vrot.slane %v26, %v73
    %76 = vbcast.lane.b32.xlu0 %v74, 256
    %v77 = vpop.permute.xlu0 %76
    %v78 = vlaneseq
    %v79 = vshrl.u32 %v78, 7
    %v80 = vsub.s32 4, %v79
    %v81 = vrot.slane %v26, %v80
    %83 = vbcast.lane.b32.xlu0 %v81, 256
    %v84 = vpop.permute.xlu0 %83
    %v85 = vlaneseq
    %v86 = vshrl.u32 %v85, 7
    %v87 = vsub.s32 5, %v86
    %v88 = vrot.slane %v26, %v87
    %90 = vbcast.lane.b32.xlu0 %v88, 256
    %v91 = vpop.permute.xlu0 %90
    %v92 = vlaneseq
    %v93 = vshrl.u32 %v92, 7
    %v94 = vsub.s32 6, %v93
    %v95 = vrot.slane %v26, %v94
    %97 = vbcast.lane.b32.xlu0 %v95, 256
    %v98 = vpop.permute.xlu0 %97
    %v99 = vlaneseq
    %v100 = vshrl.u32 %v99, 7
    %v101 = vsub.s32 7, %v100
    %v102 = vrot.slane %v26, %v101
    %104 = vbcast.lane.b32.xlu0 %v102, 256
    %v105 = vpop.permute.xlu0 %104
    %v106 = vlaneseq
    %v107 = vshrl.u32 %v106, 7
    %v108 = vsub.s32 0, %v107
    %v109 = vrot.slane %v27, %v108
    %111 = vbcast.lane.b32.xlu0 %v109, 256
    %v112 = vpop.permute.xlu0 %111
    %v113 = vlaneseq
    %v114 = vshrl.u32 %v113, 7
    %v115 = vsub.s32 1, %v114
    %v116 = vrot.slane %v27, %v115
    %118 = vbcast.lane.b32.xlu0 %v116, 256
    %v119 = vpop.permute.xlu0 %118
    %v120 = vlaneseq
    %v121 = vshrl.u32 %v120, 7
    %v122 = vsub.s32 2, %v121
    %v123 = vrot.slane %v27, %v122
    %125 = vbcast.lane.b32.xlu0 %v123, 256
    %v126 = vpop.permute.xlu0 %125
    %v127 = vlaneseq
    %v128 = vshrl.u32 %v127, 7
    %v129 = vsub.s32 3, %v128
    %v130 = vrot.slane %v27, %v129
    %132 = vbcast.lane.b32.xlu0 %v130, 256
    %v133 = vpop.permute.xlu0 %132
    %v134 = vlaneseq
    %v135 = vshrl.u32 %v134, 7
    %v136 = vsub.s32 4, %v135
    %v137 = vrot.slane %v27, %v136
    %139 = vbcast.lane.b32.xlu0 %v137, 256
    %v140 = vpop.permute.xlu0 %139
    %v141 = vlaneseq
    %v142 = vshrl.u32 %v141, 7
    %v143 = vsub.s32 5, %v142
    %v144 = vrot.slane %v27, %v143
    %146 = vbcast.lane.b32.xlu0 %v144, 256
    %v147 = vpop.permute.xlu0 %146
    %v148 = vlaneseq
    %v149 = vshrl.u32 %v148, 7
    %v150 = vsub.s32 6, %v149
    %v151 = vrot.slane %v27, %v150
    %153 = vbcast.lane.b32.xlu0 %v151, 256
    %v154 = vpop.permute.xlu0 %153
    %v155 = vlaneseq
    %v156 = vshrl.u32 %v155, 7
    %v157 = vsub.s32 7, %v156
    %v158 = vrot.slane %v27, %v157
    %160 = vbcast.lane.b32.xlu0 %v158, 256
    %v161 = vpop.permute.xlu0 %160
    %v162 = vlaneseq
    %v163 = vshrl.u32 %v162, 7
    %v164 = vsub.s32 0, %v163
    %v165 = vrot.slane %v28, %v164
    %167 = vbcast.lane.b32.xlu0 %v165, 256
    %v168 = vpop.permute.xlu0 %167
    %v169 = vlaneseq
    %v170 = vshrl.u32 %v169, 7
    %v171 = vsub.s32 1, %v170
    %v172 = vrot.slane %v28, %v171
    %174 = vbcast.lane.b32.xlu0 %v172, 256
    %v175 = vpop.permute.xlu0 %174
    %v176 = vlaneseq
    %v177 = vshrl.u32 %v176, 7
    %v178 = vsub.s32 2, %v177
    %v179 = vrot.slane %v28, %v178
    %181 = vbcast.lane.b32.xlu0 %v179, 256
    %v182 = vpop.permute.xlu0 %181
    %v183 = vlaneseq
    %v184 = vshrl.u32 %v183, 7
    %v185 = vsub.s32 3, %v184
    %v186 = vrot.slane %v28, %v185
    %188 = vbcast.lane.b32.xlu0 %v186, 256
    %v189 = vpop.permute.xlu0 %188
    %v190 = vlaneseq
    %v191 = vshrl.u32 %v190, 7
    %v192 = vsub.s32 4, %v191
    %v193 = vrot.slane %v28, %v192
    %195 = vbcast.lane.b32.xlu0 %v193, 256
    %v196 = vpop.permute.xlu0 %195
    %v197 = vlaneseq
    %v198 = vshrl.u32 %v197, 7
    %v199 = vsub.s32 5, %v198
    %v200 = vrot.slane %v28, %v199
    %202 = vbcast.lane.b32.xlu0 %v200, 256
    %v203 = vpop.permute.xlu0 %202
    %v204 = vlaneseq
    %v205 = vshrl.u32 %v204, 7
    %v206 = vsub.s32 6, %v205
    %v207 = vrot.slane %v28, %v206
    %209 = vbcast.lane.b32.xlu0 %v207, 256
    %v210 = vpop.permute.xlu0 %209
    %v211 = vlaneseq
    %v212 = vshrl.u32 %v211, 7
    %v213 = vsub.s32 7, %v212
    %v214 = vrot.slane %v28, %v213
    %216 = vbcast.lane.b32.xlu0 %v214, 256
    %v217 = vpop.permute.xlu0 %216
    %v218 = vlaneseq
    %v219 = vshrl.u32 %v218, 7
    %v220 = vsub.s32 0, %v219
    %v221 = vrot.slane %v29, %v220
    %223 = vbcast.lane.b32.xlu0 %v221, 256
    %v224 = vpop.permute.xlu0 %223
    %v225 = vlaneseq
    %v226 = vshrl.u32 %v225, 7
    %v227 = vsub.s32 1, %v226
    %v228 = vrot.slane %v29, %v227
    %230 = vbcast.lane.b32.xlu0 %v228, 256
    %v231 = vpop.permute.xlu0 %230
    %v232 = vlaneseq
    %v233 = vshrl.u32 %v232, 7
    %v234 = vsub.s32 2, %v233
    %v235 = vrot.slane %v29, %v234
    %237 = vbcast.lane.b32.xlu0 %v235, 256
    %v238 = vpop.permute.xlu0 %237
    %v239 = vlaneseq
    %v240 = vshrl.u32 %v239, 7
    %v241 = vsub.s32 3, %v240
    %v242 = vrot.slane %v29, %v241
    %244 = vbcast.lane.b32.xlu0 %v242, 256
    %v245 = vpop.permute.xlu0 %244
    %v246 = vlaneseq
    %v247 = vshrl.u32 %v246, 7
    %v248 = vsub.s32 4, %v247
    %v249 = vrot.slane %v29, %v248
    %251 = vbcast.lane.b32.xlu0 %v249, 256
    %v252 = vpop.permute.xlu0 %251
    %v253 = vlaneseq
    %v254 = vshrl.u32 %v253, 7
    %v255 = vsub.s32 5, %v254
    %v256 = vrot.slane %v29, %v255
    %258 = vbcast.lane.b32.xlu0 %v256, 256
    %v259 = vpop.permute.xlu0 %258
    %v260 = vlaneseq
    %v261 = vshrl.u32 %v260, 7
    %v262 = vsub.s32 6, %v261
    %v263 = vrot.slane %v29, %v262
    %265 = vbcast.lane.b32.xlu0 %v263, 256
    %v266 = vpop.permute.xlu0 %265
    %v267 = vlaneseq
    %v268 = vshrl.u32 %v267, 7
    %v269 = vsub.s32 7, %v268
    %v270 = vrot.slane %v29, %v269
    %272 = vbcast.lane.b32.xlu0 %v270, 256
    %v273 = vpop.permute.xlu0 %272
    %v274 = vlaneseq
    %v275 = vshrl.u32 %v274, 7
    %v276 = vsub.s32 0, %v275
    %v277 = vrot.slane %v30, %v276
    %279 = vbcast.lane.b32.xlu0 %v277, 256
    %v280 = vpop.permute.xlu0 %279
    %v281 = vlaneseq
    %v282 = vshrl.u32 %v281, 7
    %v283 = vsub.s32 1, %v282
    %v284 = vrot.slane %v30, %v283
    %286 = vbcast.lane.b32.xlu0 %v284, 256
    %v287 = vpop.permute.xlu0 %286
    %v288 = vlaneseq
    %v289 = vshrl.u32 %v288, 7
    %v290 = vsub.s32 2, %v289
    %v291 = vrot.slane %v30, %v290
    %293 = vbcast.lane.b32.xlu0 %v291, 256
    %v294 = vpop.permute.xlu0 %293
    %v295 = vlaneseq
    %v296 = vshrl.u32 %v295, 7
    %v297 = vsub.s32 3, %v296
    %v298 = vrot.slane %v30, %v297
    %300 = vbcast.lane.b32.xlu0 %v298, 256
    %v301 = vpop.permute.xlu0 %300
    %v302 = vlaneseq
    %v303 = vshrl.u32 %v302, 7
    %v304 = vsub.s32 4, %v303
    %v305 = vrot.slane %v30, %v304
    %307 = vbcast.lane.b32.xlu0 %v305, 256
    %v308 = vpop.permute.xlu0 %307
    %v309 = vlaneseq
    %v310 = vshrl.u32 %v309, 7
    %v311 = vsub.s32 5, %v310
    %v312 = vrot.slane %v30, %v311
    %314 = vbcast.lane.b32.xlu0 %v312, 256
    %v315 = vpop.permute.xlu0 %314
    %v316 = vlaneseq
    %v317 = vshrl.u32 %v316, 7
    %v318 = vsub.s32 6, %v317
    %v319 = vrot.slane %v30, %v318
    %321 = vbcast.lane.b32.xlu0 %v319, 256
    %v322 = vpop.permute.xlu0 %321
    %v323 = vlaneseq
    %v324 = vshrl.u32 %v323, 7
    %v325 = vsub.s32 7, %v324
    %v326 = vrot.slane %v30, %v325
    %328 = vbcast.lane.b32.xlu0 %v326, 256
    %v329 = vpop.permute.xlu0 %328
    %v330 = vlaneseq
    %v331 = vshrl.u32 %v330, 7
    %v332 = vsub.s32 0, %v331
    %v333 = vrot.slane %v31, %v332
    %335 = vbcast.lane.b32.xlu0 %v333, 256
    %v336 = vpop.permute.xlu0 %335
    %v337 = vlaneseq
    %v338 = vshrl.u32 %v337, 7
    %v339 = vsub.s32 1, %v338
    %v340 = vrot.slane %v31, %v339
    %342 = vbcast.lane.b32.xlu0 %v340, 256
    %v343 = vpop.permute.xlu0 %342
    %v344 = vlaneseq
    %v345 = vshrl.u32 %v344, 7
    %v346 = vsub.s32 2, %v345
    %v347 = vrot.slane %v31, %v346
    %349 = vbcast.lane.b32.xlu0 %v347, 256
    %v350 = vpop.permute.xlu0 %349
    %v351 = vlaneseq
    %v352 = vshrl.u32 %v351, 7
    %v353 = vsub.s32 3, %v352
    %v354 = vrot.slane %v31, %v353
    %356 = vbcast.lane.b32.xlu0 %v354, 256
    %v357 = vpop.permute.xlu0 %356
    %v358 = vlaneseq
    %v359 = vshrl.u32 %v358, 7
    %v360 = vsub.s32 4, %v359
    %v361 = vrot.slane %v31, %v360
    %363 = vbcast.lane.b32.xlu0 %v361, 256
    %v364 = vpop.permute.xlu0 %363
    %v365 = vlaneseq
    %v366 = vshrl.u32 %v365, 7
    %v367 = vsub.s32 5, %v366
    %v368 = vrot.slane %v31, %v367
    %370 = vbcast.lane.b32.xlu0 %v368, 256
    %v371 = vpop.permute.xlu0 %370
    %v372 = vlaneseq
    %v373 = vshrl.u32 %v372, 7
    %v374 = vsub.s32 6, %v373
    %v375 = vrot.slane %v31, %v374
    %377 = vbcast.lane.b32.xlu0 %v375, 256
    %v378 = vpop.permute.xlu0 %377
    %v379 = vlaneseq
    %v380 = vshrl.u32 %v379, 7
    %v381 = vsub.s32 7, %v380
    %v382 = vrot.slane %v31, %v381
    %384 = vbcast.lane.b32.xlu0 %v382, 256
    %v385 = vpop.permute.xlu0 %384
    %v386 = vlaneseq
    %v387 = vshrl.u32 %v386, 7
    %v388 = vsub.s32 0, %v387
    %v389 = vrot.slane %v32, %v388
    %391 = vbcast.lane.b32.xlu0 %v389, 256
    %v392 = vpop.permute.xlu0 %391
    %v393 = vlaneseq
    %v394 = vshrl.u32 %v393, 7
    %v395 = vsub.s32 1, %v394
    %v396 = vrot.slane %v32, %v395
    %398 = vbcast.lane.b32.xlu0 %v396, 256
    %v399 = vpop.permute.xlu0 %398
    %v400 = vlaneseq
    %v401 = vshrl.u32 %v400, 7
    %v402 = vsub.s32 2, %v401
    %v403 = vrot.slane %v32, %v402
    %405 = vbcast.lane.b32.xlu0 %v403, 256
    %v406 = vpop.permute.xlu0 %405
    %v407 = vlaneseq
    %v408 = vshrl.u32 %v407, 7
    %v409 = vsub.s32 3, %v408
    %v410 = vrot.slane %v32, %v409
    %412 = vbcast.lane.b32.xlu0 %v410, 256
    %v413 = vpop.permute.xlu0 %412
    %v414 = vlaneseq
    %v415 = vshrl.u32 %v414, 7
    %v416 = vsub.s32 4, %v415
    %v417 = vrot.slane %v32, %v416
    %419 = vbcast.lane.b32.xlu0 %v417, 256
    %v420 = vpop.permute.xlu0 %419
    %v421 = vlaneseq
    %v422 = vshrl.u32 %v421, 7
    %v423 = vsub.s32 5, %v422
    %v424 = vrot.slane %v32, %v423
    %426 = vbcast.lane.b32.xlu0 %v424, 256
    %v427 = vpop.permute.xlu0 %426
    %v428 = vlaneseq
    %v429 = vshrl.u32 %v428, 7
    %v430 = vsub.s32 6, %v429
    %v431 = vrot.slane %v32, %v430
    %433 = vbcast.lane.b32.xlu0 %v431, 256
    %v434 = vpop.permute.xlu0 %433
    %v435 = vlaneseq
    %v436 = vshrl.u32 %v435, 7
    %v437 = vsub.s32 7, %v436
    %v438 = vrot.slane %v32, %v437
    %440 = vbcast.lane.b32.xlu0 %v438, 256
    %v441 = vpop.permute.xlu0 %440
    %v442 = vlaneseq
    %v443 = vshrl.u32 %v442, 7
    %v444 = vsub.s32 0, %v443
    %v445 = vrot.slane %v33, %v444
    %447 = vbcast.lane.b32.xlu0 %v445, 256
    %v448 = vpop.permute.xlu0 %447
    %v449 = vlaneseq
    %v450 = vshrl.u32 %v449, 7
    %v451 = vsub.s32 1, %v450
    %v452 = vrot.slane %v33, %v451
    %454 = vbcast.lane.b32.xlu0 %v452, 256
    %v455 = vpop.permute.xlu0 %454
    %v456 = vlaneseq
    %v457 = vshrl.u32 %v456, 7
    %v458 = vsub.s32 2, %v457
    %v459 = vrot.slane %v33, %v458
    %461 = vbcast.lane.b32.xlu0 %v459, 256
    %v462 = vpop.permute.xlu0 %461
    %v463 = vlaneseq
    %v464 = vshrl.u32 %v463, 7
    %v465 = vsub.s32 3, %v464
    %v466 = vrot.slane %v33, %v465
    %468 = vbcast.lane.b32.xlu0 %v466, 256
    %v469 = vpop.permute.xlu0 %468
    %v470 = vlaneseq
    %v471 = vshrl.u32 %v470, 7
    %v472 = vsub.s32 4, %v471
    %v473 = vrot.slane %v33, %v472
    %475 = vbcast.lane.b32.xlu0 %v473, 256
    %v476 = vpop.permute.xlu0 %475
    %v477 = vlaneseq
    %v478 = vshrl.u32 %v477, 7
    %v479 = vsub.s32 5, %v478
    %v480 = vrot.slane %v33, %v479
    %482 = vbcast.lane.b32.xlu0 %v480, 256
    %v483 = vpop.permute.xlu0 %482
    %v484 = vlaneseq
    %v485 = vshrl.u32 %v484, 7
    %v486 = vsub.s32 6, %v485
    %v487 = vrot.slane %v33, %v486
    %489 = vbcast.lane.b32.xlu0 %v487, 256
    %v490 = vpop.permute.xlu0 %489
    %v491 = vlaneseq
    %v492 = vshrl.u32 %v491, 7
    %v493 = vsub.s32 7, %v492
    %v494 = vrot.slane %v33, %v493
    %496 = vbcast.lane.b32.xlu0 %v494, 256
    %v497 = vpop.permute.xlu0 %496
    %v498 = vcombine.low %v56, %v63
    %v499 = vcombine.high %v56, %v63
    %v501 = vunpack.c.l.s4 1983009808
    %v502 = vunpack.c.0.s8 %v501
    %v503 = vlaneseq
    %v504 = vshrl.u32 %v503, 7
    %v505 = vsub.s32 %v502, %v504
    %v506 = vrot.slane %v498, %v505
    %v508 = vunpack.c.l.s4 1983009808
    %v509 = vunpack.c.0.s8 %v508
    %v510 = vlaneseq
    %v511 = vshrl.u32 %v510, 7
    %v512 = vsub.s32 %v509, %v511
    %v513 = vrot.slane %v499, %v512
    %v514 = vcombine.low %v70, %v77
    %v515 = vcombine.high %v70, %v77
    %v517 = vunpack.c.l.s4 1983009808
    %v518 = vunpack.c.0.s8 %v517
    %v519 = vlaneseq
    %v520 = vshrl.u32 %v519, 7
    %v521 = vsub.s32 %v518, %v520
    %v522 = vrot.slane %v514, %v521
    %v524 = vunpack.c.l.s4 1983009808
    %v525 = vunpack.c.0.s8 %v524
    %v526 = vlaneseq
    %v527 = vshrl.u32 %v526, 7
    %v528 = vsub.s32 %v525, %v527
    %v529 = vrot.slane %v515, %v528
    %v530 = vcombine.low %v506, %v506
    %v531 = vcombine.high %v506, %v506
    %v533 = vunpack.c.l.s4 1934713408
    %v534 = vunpack.c.0.s8 %v533
    %v535 = vlaneseq
    %v536 = vshrl.u32 %v535, 7
    %v537 = vsub.s32 %v534, %v536
    %v538 = vrot.slane %v530, %v537
    %v540 = vunpack.c.l.s4 1934713408
    %v541 = vunpack.c.0.s8 %v540
    %v542 = vlaneseq
    %v543 = vshrl.u32 %v542, 7
    %v544 = vsub.s32 %v541, %v543
    %v545 = vrot.slane %v531, %v544
    %v546 = vcombine.low %v513, %v513
    %v547 = vcombine.high %v513, %v513
    %v549 = vunpack.c.l.s4 1934713408
    %v550 = vunpack.c.0.s8 %v549
    %v551 = vlaneseq
    %v552 = vshrl.u32 %v551, 7
    %v553 = vsub.s32 %v550, %v552
    %v554 = vrot.slane %v546, %v553
    %v556 = vunpack.c.l.s4 1934713408
    %v557 = vunpack.c.0.s8 %v556
    %v558 = vlaneseq
    %v559 = vshrl.u32 %v558, 7
    %v560 = vsub.s32 %v557, %v559
    %v561 = vrot.slane %v547, %v560
    %v562 = vcombine.low %v522, %v522
    %v563 = vcombine.high %v522, %v522
    %v565 = vunpack.c.l.s4 1934713408
    %v566 = vunpack.c.0.s8 %v565
    %v567 = vlaneseq
    %v568 = vshrl.u32 %v567, 7
    %v569 = vsub.s32 %v566, %v568
    %v570 = vrot.slane %v562, %v569
    %v572 = vunpack.c.l.s4 1934713408
    %v573 = vunpack.c.0.s8 %v572
    %v574 = vlaneseq
    %v575 = vshrl.u32 %v574, 7
    %v576 = vsub.s32 %v573, %v575
    %v577 = vrot.slane %v563, %v576
    %v578 = vcombine.low %v529, %v529
    %v579 = vcombine.high %v529, %v529
    %v581 = vunpack.c.l.s4 1934713408
    %v582 = vunpack.c.0.s8 %v581
    %v583 = vlaneseq
    %v584 = vshrl.u32 %v583, 7
    %v585 = vsub.s32 %v582, %v584
    %v586 = vrot.slane %v578, %v585
    %v588 = vunpack.c.l.s4 1934713408
    %v589 = vunpack.c.0.s8 %v588
    %v590 = vlaneseq
    %v591 = vshrl.u32 %v590, 7
    %v592 = vsub.s32 %v589, %v591
    %v593 = vrot.slane %v579, %v592
    %v594 = vcombine.low %v538, %v570
    %v595 = vcombine.high %v538, %v570
    %v596 = vcombine.low %v545, %v577
    %v597 = vcombine.high %v545, %v577
    %v598 = vcombine.low %v554, %v586
    %v599 = vcombine.high %v554, %v586
    %v600 = vcombine.low %v561, %v593
    %v601 = vcombine.high %v561, %v593
    %v602 = vcombine.low %v84, %v91
    %v603 = vcombine.high %v84, %v91
    %v605 = vunpack.c.l.s4 1983009808
    %v606 = vunpack.c.0.s8 %v605
    %v607 = vlaneseq
    %v608 = vshrl.u32 %v607, 7
    %v609 = vsub.s32 %v606, %v608
    %v610 = vrot.slane %v602, %v609
    %v612 = vunpack.c.l.s4 1983009808
    %v613 = vunpack.c.0.s8 %v612
    %v614 = vlaneseq
    %v615 = vshrl.u32 %v614, 7
    %v616 = vsub.s32 %v613, %v615
    %v617 = vrot.slane %v603, %v616
    %v618 = vcombine.low %v98, %v105
    %v619 = vcombine.high %v98, %v105
    %v621 = vunpack.c.l.s4 1983009808
    %v622 = vunpack.c.0.s8 %v621
    %v623 = vlaneseq
    %v624 = vshrl.u32 %v623, 7
    %v625 = vsub.s32 %v622, %v624
    %v626 = vrot.slane %v618, %v625
    %v628 = vunpack.c.l.s4 1983009808
    %v629 = vunpack.c.0.s8 %v628
    %v630 = vlaneseq
    %v631 = vshrl.u32 %v630, 7
    %v632 = vsub.s32 %v629, %v631
    %v633 = vrot.slane %v619, %v632
    %v634 = vcombine.low %v610, %v610
    %v635 = vcombine.high %v610, %v610
    %v637 = vunpack.c.l.s4 1934713408
    %v638 = vunpack.c.0.s8 %v637
    %v639 = vlaneseq
    %v640 = vshrl.u32 %v639, 7
    %v641 = vsub.s32 %v638, %v640
    %v642 = vrot.slane %v634, %v641
    %v644 = vunpack.c.l.s4 1934713408
    %v645 = vunpack.c.0.s8 %v644
    %v646 = vlaneseq
    %v647 = vshrl.u32 %v646, 7
    %v648 = vsub.s32 %v645, %v647
    %v649 = vrot.slane %v635, %v648
    %v650 = vcombine.low %v617, %v617
    %v651 = vcombine.high %v617, %v617
    %v653 = vunpack.c.l.s4 1934713408
    %v654 = vunpack.c.0.s8 %v653
    %v655 = vlaneseq
    %v656 = vshrl.u32 %v655, 7
    %v657 = vsub.s32 %v654, %v656
    %v658 = vrot.slane %v650, %v657
    %v660 = vunpack.c.l.s4 1934713408
    %v661 = vunpack.c.0.s8 %v660
    %v662 = vlaneseq
    %v663 = vshrl.u32 %v662, 7
    %v664 = vsub.s32 %v661, %v663
    %v665 = vrot.slane %v651, %v664
    %v666 = vcombine.low %v626, %v626
    %v667 = vcombine.high %v626, %v626
    %v669 = vunpack.c.l.s4 1934713408
    %v670 = vunpack.c.0.s8 %v669
    %v671 = vlaneseq
    %v672 = vshrl.u32 %v671, 7
    %v673 = vsub.s32 %v670, %v672
    %v674 = vrot.slane %v666, %v673
    %v676 = vunpack.c.l.s4 1934713408
    %v677 = vunpack.c.0.s8 %v676
    %v678 = vlaneseq
    %v679 = vshrl.u32 %v678, 7
    %v680 = vsub.s32 %v677, %v679
    %v681 = vrot.slane %v667, %v680
    %v682 = vcombine.low %v633, %v633
    %v683 = vcombine.high %v633, %v633
    %v685 = vunpack.c.l.s4 1934713408
    %v686 = vunpack.c.0.s8 %v685
    %v687 = vlaneseq
    %v688 = vshrl.u32 %v687, 7
    %v689 = vsub.s32 %v686, %v688
    %v690 = vrot.slane %v682, %v689
    %v692 = vunpack.c.l.s4 1934713408
    %v693 = vunpack.c.0.s8 %v692
    %v694 = vlaneseq
    %v695 = vshrl.u32 %v694, 7
    %v696 = vsub.s32 %v693, %v695
    %v697 = vrot.slane %v683, %v696
    %v698 = vcombine.low %v642, %v674
    %v699 = vcombine.high %v642, %v674
    %v700 = vcombine.low %v649, %v681
    %v701 = vcombine.high %v649, %v681
    %v702 = vcombine.low %v658, %v690
    %v703 = vcombine.high %v658, %v690
    %v704 = vcombine.low %v665, %v697
    %v705 = vcombine.high %v665, %v697
    %v706 = vcombine.low %v112, %v119
    %v707 = vcombine.high %v112, %v119
    %v709 = vunpack.c.l.s4 1983009808
    %v710 = vunpack.c.0.s8 %v709
    %v711 = vlaneseq
    %v712 = vshrl.u32 %v711, 7
    %v713 = vsub.s32 %v710, %v712
    %v714 = vrot.slane %v706, %v713
    %v716 = vunpack.c.l.s4 1983009808
    %v717 = vunpack.c.0.s8 %v716
    %v718 = vlaneseq
    %v719 = vshrl.u32 %v718, 7
    %v720 = vsub.s32 %v717, %v719
    %v721 = vrot.slane %v707, %v720
    %v722 = vcombine.low %v126, %v133
    %v723 = vcombine.high %v126, %v133
    %v725 = vunpack.c.l.s4 1983009808
    %v726 = vunpack.c.0.s8 %v725
    %v727 = vlaneseq
    %v728 = vshrl.u32 %v727, 7
    %v729 = vsub.s32 %v726, %v728
    %v730 = vrot.slane %v722, %v729
    %v732 = vunpack.c.l.s4 1983009808
    %v733 = vunpack.c.0.s8 %v732
    %v734 = vlaneseq
    %v735 = vshrl.u32 %v734, 7
    %v736 = vsub.s32 %v733, %v735
    %v737 = vrot.slane %v723, %v736
    %v738 = vcombine.low %v714, %v714
    %v739 = vcombine.high %v714, %v714
    %v741 = vunpack.c.l.s4 1934713408
    %v742 = vunpack.c.0.s8 %v741
    %v743 = vlaneseq
    %v744 = vshrl.u32 %v743, 7
    %v745 = vsub.s32 %v742, %v744
    %v746 = vrot.slane %v738, %v745
    %v748 = vunpack.c.l.s4 1934713408
    %v749 = vunpack.c.0.s8 %v748
    %v750 = vlaneseq
    %v751 = vshrl.u32 %v750, 7
    %v752 = vsub.s32 %v749, %v751
    %v753 = vrot.slane %v739, %v752
    %v754 = vcombine.low %v721, %v721
    %v755 = vcombine.high %v721, %v721
    %v757 = vunpack.c.l.s4 1934713408
    %v758 = vunpack.c.0.s8 %v757
    %v759 = vlaneseq
    %v760 = vshrl.u32 %v759, 7
    %v761 = vsub.s32 %v758, %v760
    %v762 = vrot.slane %v754, %v761
    %v764 = vunpack.c.l.s4 1934713408
    %v765 = vunpack.c.0.s8 %v764
    %v766 = vlaneseq
    %v767 = vshrl.u32 %v766, 7
    %v768 = vsub.s32 %v765, %v767
    %v769 = vrot.slane %v755, %v768
    %v770 = vcombine.low %v730, %v730
    %v771 = vcombine.high %v730, %v730
    %v773 = vunpack.c.l.s4 1934713408
    %v774 = vunpack.c.0.s8 %v773
    %v775 = vlaneseq
    %v776 = vshrl.u32 %v775, 7
    %v777 = vsub.s32 %v774, %v776
    %v778 = vrot.slane %v770, %v777
    %v780 = vunpack.c.l.s4 1934713408
    %v781 = vunpack.c.0.s8 %v780
    %v782 = vlaneseq
    %v783 = vshrl.u32 %v782, 7
    %v784 = vsub.s32 %v781, %v783
    %v785 = vrot.slane %v771, %v784
    %v786 = vcombine.low %v737, %v737
    %v787 = vcombine.high %v737, %v737
    %v789 = vunpack.c.l.s4 1934713408
    %v790 = vunpack.c.0.s8 %v789
    %v791 = vlaneseq
    %v792 = vshrl.u32 %v791, 7
    %v793 = vsub.s32 %v790, %v792
    %v794 = vrot.slane %v786, %v793
    %v796 = vunpack.c.l.s4 1934713408
    %v797 = vunpack.c.0.s8 %v796
    %v798 = vlaneseq
    %v799 = vshrl.u32 %v798, 7
    %v800 = vsub.s32 %v797, %v799
    %v801 = vrot.slane %v787, %v800
    %v802 = vcombine.low %v746, %v778
    %v803 = vcombine.high %v746, %v778
    %v804 = vcombine.low %v753, %v785
    %v805 = vcombine.high %v753, %v785
    %v806 = vcombine.low %v762, %v794
    %v807 = vcombine.high %v762, %v794
    %v808 = vcombine.low %v769, %v801
    %v809 = vcombine.high %v769, %v801
    %v810 = vcombine.low %v140, %v147
    %v811 = vcombine.high %v140, %v147
    %v813 = vunpack.c.l.s4 1983009808
    %v814 = vunpack.c.0.s8 %v813
    %v815 = vlaneseq
    %v816 = vshrl.u32 %v815, 7
    %v817 = vsub.s32 %v814, %v816
    %v818 = vrot.slane %v810, %v817
    %v820 = vunpack.c.l.s4 1983009808
    %v821 = vunpack.c.0.s8 %v820
    %v822 = vlaneseq
    %v823 = vshrl.u32 %v822, 7
    %v824 = vsub.s32 %v821, %v823
    %v825 = vrot.slane %v811, %v824
    %v826 = vcombine.low %v154, %v161
    %v827 = vcombine.high %v154, %v161
    %v829 = vunpack.c.l.s4 1983009808
    %v830 = vunpack.c.0.s8 %v829
    %v831 = vlaneseq
    %v832 = vshrl.u32 %v831, 7
    %v833 = vsub.s32 %v830, %v832
    %v834 = vrot.slane %v826, %v833
    %v836 = vunpack.c.l.s4 1983009808
    %v837 = vunpack.c.0.s8 %v836
    %v838 = vlaneseq
    %v839 = vshrl.u32 %v838, 7
    %v840 = vsub.s32 %v837, %v839
    %v841 = vrot.slane %v827, %v840
    %v842 = vcombine.low %v818, %v818
    %v843 = vcombine.high %v818, %v818
    %v845 = vunpack.c.l.s4 1934713408
    %v846 = vunpack.c.0.s8 %v845
    %v847 = vlaneseq
    %v848 = vshrl.u32 %v847, 7
    %v849 = vsub.s32 %v846, %v848
    %v850 = vrot.slane %v842, %v849
    %v852 = vunpack.c.l.s4 1934713408
    %v853 = vunpack.c.0.s8 %v852
    %v854 = vlaneseq
    %v855 = vshrl.u32 %v854, 7
    %v856 = vsub.s32 %v853, %v855
    %v857 = vrot.slane %v843, %v856
    %v858 = vcombine.low %v825, %v825
    %v859 = vcombine.high %v825, %v825
    %v861 = vunpack.c.l.s4 1934713408
    %v862 = vunpack.c.0.s8 %v861
    %v863 = vlaneseq
    %v864 = vshrl.u32 %v863, 7
    %v865 = vsub.s32 %v862, %v864
    %v866 = vrot.slane %v858, %v865
    %v868 = vunpack.c.l.s4 1934713408
    %v869 = vunpack.c.0.s8 %v868
    %v870 = vlaneseq
    %v871 = vshrl.u32 %v870, 7
    %v872 = vsub.s32 %v869, %v871
    %v873 = vrot.slane %v859, %v872
    %v874 = vcombine.low %v834, %v834
    %v875 = vcombine.high %v834, %v834
    %v877 = vunpack.c.l.s4 1934713408
    %v878 = vunpack.c.0.s8 %v877
    %v879 = vlaneseq
    %v880 = vshrl.u32 %v879, 7
    %v881 = vsub.s32 %v878, %v880
    %v882 = vrot.slane %v874, %v881
    %v884 = vunpack.c.l.s4 1934713408
    %v885 = vunpack.c.0.s8 %v884
    %v886 = vlaneseq
    %v887 = vshrl.u32 %v886, 7
    %v888 = vsub.s32 %v885, %v887
    %v889 = vrot.slane %v875, %v888
    %v890 = vcombine.low %v841, %v841
    %v891 = vcombine.high %v841, %v841
    %v893 = vunpack.c.l.s4 1934713408
    %v894 = vunpack.c.0.s8 %v893
    %v895 = vlaneseq
    %v896 = vshrl.u32 %v895, 7
    %v897 = vsub.s32 %v894, %v896
    %v898 = vrot.slane %v890, %v897
    %v900 = vunpack.c.l.s4 1934713408
    %v901 = vunpack.c.0.s8 %v900
    %v902 = vlaneseq
    %v903 = vshrl.u32 %v902, 7
    %v904 = vsub.s32 %v901, %v903
    %v905 = vrot.slane %v891, %v904
    %v906 = vcombine.low %v850, %v882
    %v907 = vcombine.high %v850, %v882
    %v908 = vcombine.low %v857, %v889
    %v909 = vcombine.high %v857, %v889
    %v910 = vcombine.low %v866, %v898
    %v911 = vcombine.high %v866, %v898
    %v912 = vcombine.low %v873, %v905
    %v913 = vcombine.high %v873, %v905
    %v914 = vcombine.low %v168, %v175
    %v915 = vcombine.high %v168, %v175
    %v917 = vunpack.c.l.s4 1983009808
    %v918 = vunpack.c.0.s8 %v917
    %v919 = vlaneseq
    %v920 = vshrl.u32 %v919, 7
    %v921 = vsub.s32 %v918, %v920
    %v922 = vrot.slane %v914, %v921
    %v924 = vunpack.c.l.s4 1983009808
    %v925 = vunpack.c.0.s8 %v924
    %v926 = vlaneseq
    %v927 = vshrl.u32 %v926, 7
    %v928 = vsub.s32 %v925, %v927
    %v929 = vrot.slane %v915, %v928
    %v930 = vcombine.low %v182, %v189
    %v931 = vcombine.high %v182, %v189
    %v933 = vunpack.c.l.s4 1983009808
    %v934 = vunpack.c.0.s8 %v933
    %v935 = vlaneseq
    %v936 = vshrl.u32 %v935, 7
    %v937 = vsub.s32 %v934, %v936
    %v938 = vrot.slane %v930, %v937
    %v940 = vunpack.c.l.s4 1983009808
    %v941 = vunpack.c.0.s8 %v940
    %v942 = vlaneseq
    %v943 = vshrl.u32 %v942, 7
    %v944 = vsub.s32 %v941, %v943
    %v945 = vrot.slane %v931, %v944
    %v946 = vcombine.low %v922, %v922
    %v947 = vcombine.high %v922, %v922
    %v949 = vunpack.c.l.s4 1934713408
    %v950 = vunpack.c.0.s8 %v949
    %v951 = vlaneseq
    %v952 = vshrl.u32 %v951, 7
    %v953 = vsub.s32 %v950, %v952
    %v954 = vrot.slane %v946, %v953
    %v956 = vunpack.c.l.s4 1934713408
    %v957 = vunpack.c.0.s8 %v956
    %v958 = vlaneseq
    %v959 = vshrl.u32 %v958, 7
    %v960 = vsub.s32 %v957, %v959
    %v961 = vrot.slane %v947, %v960
    %v962 = vcombine.low %v929, %v929
    %v963 = vcombine.high %v929, %v929
    %v965 = vunpack.c.l.s4 1934713408
    %v966 = vunpack.c.0.s8 %v965
    %v967 = vlaneseq
    %v968 = vshrl.u32 %v967, 7
    %v969 = vsub.s32 %v966, %v968
    %v970 = vrot.slane %v962, %v969
    %v972 = vunpack.c.l.s4 1934713408
    %v973 = vunpack.c.0.s8 %v972
    %v974 = vlaneseq
    %v975 = vshrl.u32 %v974, 7
    %v976 = vsub.s32 %v973, %v975
    %v977 = vrot.slane %v963, %v976
    %v978 = vcombine.low %v938, %v938
    %v979 = vcombine.high %v938, %v938
    %v981 = vunpack.c.l.s4 1934713408
    %v982 = vunpack.c.0.s8 %v981
    %v983 = vlaneseq
    %v984 = vshrl.u32 %v983, 7
    %v985 = vsub.s32 %v982, %v984
    %v986 = vrot.slane %v978, %v985
    %v988 = vunpack.c.l.s4 1934713408
    %v989 = vunpack.c.0.s8 %v988
    %v990 = vlaneseq
    %v991 = vshrl.u32 %v990, 7
    %v992 = vsub.s32 %v989, %v991
    %v993 = vrot.slane %v979, %v992
    %v994 = vcombine.low %v945, %v945
    %v995 = vcombine.high %v945, %v945
    %v997 = vunpack.c.l.s4 1934713408
    %v998 = vunpack.c.0.s8 %v997
    %v999 = vlaneseq
    %v1000 = vshrl.u32 %v999, 7
    %v1001 = vsub.s32 %v998, %v1000
    %v1002 = vrot.slane %v994, %v1001
    %v1004 = vunpack.c.l.s4 1934713408
    %v1005 = vunpack.c.0.s8 %v1004
    %v1006 = vlaneseq
    %v1007 = vshrl.u32 %v1006, 7
    %v1008 = vsub.s32 %v1005, %v1007
    %v1009 = vrot.slane %v995, %v1008
    %v1010 = vcombine.low %v954, %v986
    %v1011 = vcombine.high %v954, %v986
    %v1012 = vcombine.low %v961, %v993
    %v1013 = vcombine.high %v961, %v993
    %v1014 = vcombine.low %v970, %v1002
    %v1015 = vcombine.high %v970, %v1002
    %v1016 = vcombine.low %v977, %v1009
    %v1017 = vcombine.high %v977, %v1009
    %v1018 = vcombine.low %v196, %v203
    %v1019 = vcombine.high %v196, %v203
    %v1021 = vunpack.c.l.s4 1983009808
    %v1022 = vunpack.c.0.s8 %v1021
    %v1023 = vlaneseq
    %v1024 = vshrl.u32 %v1023, 7
    %v1025 = vsub.s32 %v1022, %v1024
    %v1026 = vrot.slane %v1018, %v1025
    %v1028 = vunpack.c.l.s4 1983009808
    %v1029 = vunpack.c.0.s8 %v1028
    %v1030 = vlaneseq
    %v1031 = vshrl.u32 %v1030, 7
    %v1032 = vsub.s32 %v1029, %v1031
    %v1033 = vrot.slane %v1019, %v1032
    %v1034 = vcombine.low %v210, %v217
    %v1035 = vcombine.high %v210, %v217
    %v1037 = vunpack.c.l.s4 1983009808
    %v1038 = vunpack.c.0.s8 %v1037
    %v1039 = vlaneseq
    %v1040 = vshrl.u32 %v1039, 7
    %v1041 = vsub.s32 %v1038, %v1040
    %v1042 = vrot.slane %v1034, %v1041
    %v1044 = vunpack.c.l.s4 1983009808
    %v1045 = vunpack.c.0.s8 %v1044
    %v1046 = vlaneseq
    %v1047 = vshrl.u32 %v1046, 7
    %v1048 = vsub.s32 %v1045, %v1047
    %v1049 = vrot.slane %v1035, %v1048
    %v1050 = vcombine.low %v1026, %v1026
    %v1051 = vcombine.high %v1026, %v1026
    %v1053 = vunpack.c.l.s4 1934713408
    %v1054 = vunpack.c.0.s8 %v1053
    %v1055 = vlaneseq
    %v1056 = vshrl.u32 %v1055, 7
    %v1057 = vsub.s32 %v1054, %v1056
    %v1058 = vrot.slane %v1050, %v1057
    %v1060 = vunpack.c.l.s4 1934713408
    %v1061 = vunpack.c.0.s8 %v1060
    %v1062 = vlaneseq
    %v1063 = vshrl.u32 %v1062, 7
    %v1064 = vsub.s32 %v1061, %v1063
    %v1065 = vrot.slane %v1051, %v1064
    %v1066 = vcombine.low %v1033, %v1033
    %v1067 = vcombine.high %v1033, %v1033
    %v1069 = vunpack.c.l.s4 1934713408
    %v1070 = vunpack.c.0.s8 %v1069
    %v1071 = vlaneseq
    %v1072 = vshrl.u32 %v1071, 7
    %v1073 = vsub.s32 %v1070, %v1072
    %v1074 = vrot.slane %v1066, %v1073
    %v1076 = vunpack.c.l.s4 1934713408
    %v1077 = vunpack.c.0.s8 %v1076
    %v1078 = vlaneseq
    %v1079 = vshrl.u32 %v1078, 7
    %v1080 = vsub.s32 %v1077, %v1079
    %v1081 = vrot.slane %v1067, %v1080
    %v1082 = vcombine.low %v1042, %v1042
    %v1083 = vcombine.high %v1042, %v1042
    %v1085 = vunpack.c.l.s4 1934713408
    %v1086 = vunpack.c.0.s8 %v1085
    %v1087 = vlaneseq
    %v1088 = vshrl.u32 %v1087, 7
    %v1089 = vsub.s32 %v1086, %v1088
    %v1090 = vrot.slane %v1082, %v1089
    %v1092 = vunpack.c.l.s4 1934713408
    %v1093 = vunpack.c.0.s8 %v1092
    %v1094 = vlaneseq
    %v1095 = vshrl.u32 %v1094, 7
    %v1096 = vsub.s32 %v1093, %v1095
    %v1097 = vrot.slane %v1083, %v1096
    %v1098 = vcombine.low %v1049, %v1049
    %v1099 = vcombine.high %v1049, %v1049
    %v1101 = vunpack.c.l.s4 1934713408
    %v1102 = vunpack.c.0.s8 %v1101
    %v1103 = vlaneseq
    %v1104 = vshrl.u32 %v1103, 7
    %v1105 = vsub.s32 %v1102, %v1104
    %v1106 = vrot.slane %v1098, %v1105
    %v1108 = vunpack.c.l.s4 1934713408
    %v1109 = vunpack.c.0.s8 %v1108
    %v1110 = vlaneseq
    %v1111 = vshrl.u32 %v1110, 7
    %v1112 = vsub.s32 %v1109, %v1111
    %v1113 = vrot.slane %v1099, %v1112
    %v1114 = vcombine.low %v1058, %v1090
    %v1115 = vcombine.high %v1058, %v1090
    %v1116 = vcombine.low %v1065, %v1097
    %v1117 = vcombine.high %v1065, %v1097
    %v1118 = vcombine.low %v1074, %v1106
    %v1119 = vcombine.high %v1074, %v1106
    %v1120 = vcombine.low %v1081, %v1113
    %v1121 = vcombine.high %v1081, %v1113
    %v1122 = vcombine.low %v224, %v231
    %v1123 = vcombine.high %v224, %v231
    %v1125 = vunpack.c.l.s4 1983009808
    %v1126 = vunpack.c.0.s8 %v1125
    %v1127 = vlaneseq
    %v1128 = vshrl.u32 %v1127, 7
    %v1129 = vsub.s32 %v1126, %v1128
    %v1130 = vrot.slane %v1122, %v1129
    %v1132 = vunpack.c.l.s4 1983009808
    %v1133 = vunpack.c.0.s8 %v1132
    %v1134 = vlaneseq
    %v1135 = vshrl.u32 %v1134, 7
    %v1136 = vsub.s32 %v1133, %v1135
    %v1137 = vrot.slane %v1123, %v1136
    %v1138 = vcombine.low %v238, %v245
    %v1139 = vcombine.high %v238, %v245
    %v1141 = vunpack.c.l.s4 1983009808
    %v1142 = vunpack.c.0.s8 %v1141
    %v1143 = vlaneseq
    %v1144 = vshrl.u32 %v1143, 7
    %v1145 = vsub.s32 %v1142, %v1144
    %v1146 = vrot.slane %v1138, %v1145
    %v1148 = vunpack.c.l.s4 1983009808
    %v1149 = vunpack.c.0.s8 %v1148
    %v1150 = vlaneseq
    %v1151 = vshrl.u32 %v1150, 7
    %v1152 = vsub.s32 %v1149, %v1151
    %v1153 = vrot.slane %v1139, %v1152
    %v1154 = vcombine.low %v1130, %v1130
    %v1155 = vcombine.high %v1130, %v1130
    %v1157 = vunpack.c.l.s4 1934713408
    %v1158 = vunpack.c.0.s8 %v1157
    %v1159 = vlaneseq
    %v1160 = vshrl.u32 %v1159, 7
    %v1161 = vsub.s32 %v1158, %v1160
    %v1162 = vrot.slane %v1154, %v1161
    %v1164 = vunpack.c.l.s4 1934713408
    %v1165 = vunpack.c.0.s8 %v1164
    %v1166 = vlaneseq
    %v1167 = vshrl.u32 %v1166, 7
    %v1168 = vsub.s32 %v1165, %v1167
    %v1169 = vrot.slane %v1155, %v1168
    %v1170 = vcombine.low %v1137, %v1137
    %v1171 = vcombine.high %v1137, %v1137
    %v1173 = vunpack.c.l.s4 1934713408
    %v1174 = vunpack.c.0.s8 %v1173
    %v1175 = vlaneseq
    %v1176 = vshrl.u32 %v1175, 7
    %v1177 = vsub.s32 %v1174, %v1176
    %v1178 = vrot.slane %v1170, %v1177
    %v1180 = vunpack.c.l.s4 1934713408
    %v1181 = vunpack.c.0.s8 %v1180
    %v1182 = vlaneseq
    %v1183 = vshrl.u32 %v1182, 7
    %v1184 = vsub.s32 %v1181, %v1183
    %v1185 = vrot.slane %v1171, %v1184
    %v1186 = vcombine.low %v1146, %v1146
    %v1187 = vcombine.high %v1146, %v1146
    %v1189 = vunpack.c.l.s4 1934713408
    %v1190 = vunpack.c.0.s8 %v1189
    %v1191 = vlaneseq
    %v1192 = vshrl.u32 %v1191, 7
    %v1193 = vsub.s32 %v1190, %v1192
    %v1194 = vrot.slane %v1186, %v1193
    %v1196 = vunpack.c.l.s4 1934713408
    %v1197 = vunpack.c.0.s8 %v1196
    %v1198 = vlaneseq
    %v1199 = vshrl.u32 %v1198, 7
    %v1200 = vsub.s32 %v1197, %v1199
    %v1201 = vrot.slane %v1187, %v1200
    %v1202 = vcombine.low %v1153, %v1153
    %v1203 = vcombine.high %v1153, %v1153
    %v1205 = vunpack.c.l.s4 1934713408
    %v1206 = vunpack.c.0.s8 %v1205
    %v1207 = vlaneseq
    %v1208 = vshrl.u32 %v1207, 7
    %v1209 = vsub.s32 %v1206, %v1208
    %v1210 = vrot.slane %v1202, %v1209
    %v1212 = vunpack.c.l.s4 1934713408
    %v1213 = vunpack.c.0.s8 %v1212
    %v1214 = vlaneseq
    %v1215 = vshrl.u32 %v1214, 7
    %v1216 = vsub.s32 %v1213, %v1215
    %v1217 = vrot.slane %v1203, %v1216
    %v1218 = vcombine.low %v1162, %v1194
    %v1219 = vcombine.high %v1162, %v1194
    %v1220 = vcombine.low %v1169, %v1201
    %v1221 = vcombine.high %v1169, %v1201
    %v1222 = vcombine.low %v1178, %v1210
    %v1223 = vcombine.high %v1178, %v1210
    %v1224 = vcombine.low %v1185, %v1217
    %v1225 = vcombine.high %v1185, %v1217
    %v1226 = vcombine.low %v252, %v259
    %v1227 = vcombine.high %v252, %v259
    %v1229 = vunpack.c.l.s4 1983009808
    %v1230 = vunpack.c.0.s8 %v1229
    %v1231 = vlaneseq
    %v1232 = vshrl.u32 %v1231, 7
    %v1233 = vsub.s32 %v1230, %v1232
    %v1234 = vrot.slane %v1226, %v1233
    %v1236 = vunpack.c.l.s4 1983009808
    %v1237 = vunpack.c.0.s8 %v1236
    %v1238 = vlaneseq
    %v1239 = vshrl.u32 %v1238, 7
    %v1240 = vsub.s32 %v1237, %v1239
    %v1241 = vrot.slane %v1227, %v1240
    %v1242 = vcombine.low %v266, %v273
    %v1243 = vcombine.high %v266, %v273
    %v1245 = vunpack.c.l.s4 1983009808
    %v1246 = vunpack.c.0.s8 %v1245
    %v1247 = vlaneseq
    %v1248 = vshrl.u32 %v1247, 7
    %v1249 = vsub.s32 %v1246, %v1248
    %v1250 = vrot.slane %v1242, %v1249
    %v1252 = vunpack.c.l.s4 1983009808
    %v1253 = vunpack.c.0.s8 %v1252
    %v1254 = vlaneseq
    %v1255 = vshrl.u32 %v1254, 7
    %v1256 = vsub.s32 %v1253, %v1255
    %v1257 = vrot.slane %v1243, %v1256
    %v1258 = vcombine.low %v1234, %v1234
    %v1259 = vcombine.high %v1234, %v1234
    %v1261 = vunpack.c.l.s4 1934713408
    %v1262 = vunpack.c.0.s8 %v1261
    %v1263 = vlaneseq
    %v1264 = vshrl.u32 %v1263, 7
    %v1265 = vsub.s32 %v1262, %v1264
    %v1266 = vrot.slane %v1258, %v1265
    %v1268 = vunpack.c.l.s4 1934713408
    %v1269 = vunpack.c.0.s8 %v1268
    %v1270 = vlaneseq
    %v1271 = vshrl.u32 %v1270, 7
    %v1272 = vsub.s32 %v1269, %v1271
    %v1273 = vrot.slane %v1259, %v1272
    %v1274 = vcombine.low %v1241, %v1241
    %v1275 = vcombine.high %v1241, %v1241
    %v1277 = vunpack.c.l.s4 1934713408
    %v1278 = vunpack.c.0.s8 %v1277
    %v1279 = vlaneseq
    %v1280 = vshrl.u32 %v1279, 7
    %v1281 = vsub.s32 %v1278, %v1280
    %v1282 = vrot.slane %v1274, %v1281
    %v1284 = vunpack.c.l.s4 1934713408
    %v1285 = vunpack.c.0.s8 %v1284
    %v1286 = vlaneseq
    %v1287 = vshrl.u32 %v1286, 7
    %v1288 = vsub.s32 %v1285, %v1287
    %v1289 = vrot.slane %v1275, %v1288
    %v1290 = vcombine.low %v1250, %v1250
    %v1291 = vcombine.high %v1250, %v1250
    %v1293 = vunpack.c.l.s4 1934713408
    %v1294 = vunpack.c.0.s8 %v1293
    %v1295 = vlaneseq
    %v1296 = vshrl.u32 %v1295, 7
    %v1297 = vsub.s32 %v1294, %v1296
    %v1298 = vrot.slane %v1290, %v1297
    %v1300 = vunpack.c.l.s4 1934713408
    %v1301 = vunpack.c.0.s8 %v1300
    %v1302 = vlaneseq
    %v1303 = vshrl.u32 %v1302, 7
    %v1304 = vsub.s32 %v1301, %v1303
    %v1305 = vrot.slane %v1291, %v1304
    %v1306 = vcombine.low %v1257, %v1257
    %v1307 = vcombine.high %v1257, %v1257
    %v1309 = vunpack.c.l.s4 1934713408
    %v1310 = vunpack.c.0.s8 %v1309
    %v1311 = vlaneseq
    %v1312 = vshrl.u32 %v1311, 7
    %v1313 = vsub.s32 %v1310, %v1312
    %v1314 = vrot.slane %v1306, %v1313
    %v1316 = vunpack.c.l.s4 1934713408
    %v1317 = vunpack.c.0.s8 %v1316
    %v1318 = vlaneseq
    %v1319 = vshrl.u32 %v1318, 7
    %v1320 = vsub.s32 %v1317, %v1319
    %v1321 = vrot.slane %v1307, %v1320
    %v1322 = vcombine.low %v1266, %v1298
    %v1323 = vcombine.high %v1266, %v1298
    %v1324 = vcombine.low %v1273, %v1305
    %v1325 = vcombine.high %v1273, %v1305
    %v1326 = vcombine.low %v1282, %v1314
    %v1327 = vcombine.high %v1282, %v1314
    %v1328 = vcombine.low %v1289, %v1321
    %v1329 = vcombine.high %v1289, %v1321
    %v1330 = vcombine.low %v280, %v287
    %v1331 = vcombine.high %v280, %v287
    %v1333 = vunpack.c.l.s4 1983009808
    %v1334 = vunpack.c.0.s8 %v1333
    %v1335 = vlaneseq
    %v1336 = vshrl.u32 %v1335, 7
    %v1337 = vsub.s32 %v1334, %v1336
    %v1338 = vrot.slane %v1330, %v1337
    %v1340 = vunpack.c.l.s4 1983009808
    %v1341 = vunpack.c.0.s8 %v1340
    %v1342 = vlaneseq
    %v1343 = vshrl.u32 %v1342, 7
    %v1344 = vsub.s32 %v1341, %v1343
    %v1345 = vrot.slane %v1331, %v1344
    %v1346 = vcombine.low %v294, %v301
    %v1347 = vcombine.high %v294, %v301
    %v1349 = vunpack.c.l.s4 1983009808
    %v1350 = vunpack.c.0.s8 %v1349
    %v1351 = vlaneseq
    %v1352 = vshrl.u32 %v1351, 7
    %v1353 = vsub.s32 %v1350, %v1352
    %v1354 = vrot.slane %v1346, %v1353
    %v1356 = vunpack.c.l.s4 1983009808
    %v1357 = vunpack.c.0.s8 %v1356
    %v1358 = vlaneseq
    %v1359 = vshrl.u32 %v1358, 7
    %v1360 = vsub.s32 %v1357, %v1359
    %v1361 = vrot.slane %v1347, %v1360
    %v1362 = vcombine.low %v1338, %v1338
    %v1363 = vcombine.high %v1338, %v1338
    %v1365 = vunpack.c.l.s4 1934713408
    %v1366 = vunpack.c.0.s8 %v1365
    %v1367 = vlaneseq
    %v1368 = vshrl.u32 %v1367, 7
    %v1369 = vsub.s32 %v1366, %v1368
    %v1370 = vrot.slane %v1362, %v1369
    %v1372 = vunpack.c.l.s4 1934713408
    %v1373 = vunpack.c.0.s8 %v1372
    %v1374 = vlaneseq
    %v1375 = vshrl.u32 %v1374, 7
    %v1376 = vsub.s32 %v1373, %v1375
    %v1377 = vrot.slane %v1363, %v1376
    %v1378 = vcombine.low %v1345, %v1345
    %v1379 = vcombine.high %v1345, %v1345
    %v1381 = vunpack.c.l.s4 1934713408
    %v1382 = vunpack.c.0.s8 %v1381
    %v1383 = vlaneseq
    %v1384 = vshrl.u32 %v1383, 7
    %v1385 = vsub.s32 %v1382, %v1384
    %v1386 = vrot.slane %v1378, %v1385
    %v1388 = vunpack.c.l.s4 1934713408
    %v1389 = vunpack.c.0.s8 %v1388
    %v1390 = vlaneseq
    %v1391 = vshrl.u32 %v1390, 7
    %v1392 = vsub.s32 %v1389, %v1391
    %v1393 = vrot.slane %v1379, %v1392
    %v1394 = vcombine.low %v1354, %v1354
    %v1395 = vcombine.high %v1354, %v1354
    %v1397 = vunpack.c.l.s4 1934713408
    %v1398 = vunpack.c.0.s8 %v1397
    %v1399 = vlaneseq
    %v1400 = vshrl.u32 %v1399, 7
    %v1401 = vsub.s32 %v1398, %v1400
    %v1402 = vrot.slane %v1394, %v1401
    %v1404 = vunpack.c.l.s4 1934713408
    %v1405 = vunpack.c.0.s8 %v1404
    %v1406 = vlaneseq
    %v1407 = vshrl.u32 %v1406, 7
    %v1408 = vsub.s32 %v1405, %v1407
    %v1409 = vrot.slane %v1395, %v1408
    %v1410 = vcombine.low %v1361, %v1361
    %v1411 = vcombine.high %v1361, %v1361
    %v1413 = vunpack.c.l.s4 1934713408
    %v1414 = vunpack.c.0.s8 %v1413
    %v1415 = vlaneseq
    %v1416 = vshrl.u32 %v1415, 7
    %v1417 = vsub.s32 %v1414, %v1416
    %v1418 = vrot.slane %v1410, %v1417
    %v1420 = vunpack.c.l.s4 1934713408
    %v1421 = vunpack.c.0.s8 %v1420
    %v1422 = vlaneseq
    %v1423 = vshrl.u32 %v1422, 7
    %v1424 = vsub.s32 %v1421, %v1423
    %v1425 = vrot.slane %v1411, %v1424
    %v1426 = vcombine.low %v1370, %v1402
    %v1427 = vcombine.high %v1370, %v1402
    %v1428 = vcombine.low %v1377, %v1409
    %v1429 = vcombine.high %v1377, %v1409
    %v1430 = vcombine.low %v1386, %v1418
    %v1431 = vcombine.high %v1386, %v1418
    %v1432 = vcombine.low %v1393, %v1425
    %v1433 = vcombine.high %v1393, %v1425
    %v1434 = vcombine.low %v308, %v315
    %v1435 = vcombine.high %v308, %v315
    %v1437 = vunpack.c.l.s4 1983009808
    %v1438 = vunpack.c.0.s8 %v1437
    %v1439 = vlaneseq
    %v1440 = vshrl.u32 %v1439, 7
    %v1441 = vsub.s32 %v1438, %v1440
    %v1442 = vrot.slane %v1434, %v1441
    %v1444 = vunpack.c.l.s4 1983009808
    %v1445 = vunpack.c.0.s8 %v1444
    %v1446 = vlaneseq
    %v1447 = vshrl.u32 %v1446, 7
    %v1448 = vsub.s32 %v1445, %v1447
    %v1449 = vrot.slane %v1435, %v1448
    %v1450 = vcombine.low %v322, %v329
    %v1451 = vcombine.high %v322, %v329
    %v1453 = vunpack.c.l.s4 1983009808
    %v1454 = vunpack.c.0.s8 %v1453
    %v1455 = vlaneseq
    %v1456 = vshrl.u32 %v1455, 7
    %v1457 = vsub.s32 %v1454, %v1456
    %v1458 = vrot.slane %v1450, %v1457
    %v1460 = vunpack.c.l.s4 1983009808
    %v1461 = vunpack.c.0.s8 %v1460
    %v1462 = vlaneseq
    %v1463 = vshrl.u32 %v1462, 7
    %v1464 = vsub.s32 %v1461, %v1463
    %v1465 = vrot.slane %v1451, %v1464
    %v1466 = vcombine.low %v1442, %v1442
    %v1467 = vcombine.high %v1442, %v1442
    %v1469 = vunpack.c.l.s4 1934713408
    %v1470 = vunpack.c.0.s8 %v1469
    %v1471 = vlaneseq
    %v1472 = vshrl.u32 %v1471, 7
    %v1473 = vsub.s32 %v1470, %v1472
    %v1474 = vrot.slane %v1466, %v1473
    %v1476 = vunpack.c.l.s4 1934713408
    %v1477 = vunpack.c.0.s8 %v1476
    %v1478 = vlaneseq
    %v1479 = vshrl.u32 %v1478, 7
    %v1480 = vsub.s32 %v1477, %v1479
    %v1481 = vrot.slane %v1467, %v1480
    %v1482 = vcombine.low %v1449, %v1449
    %v1483 = vcombine.high %v1449, %v1449
    %v1485 = vunpack.c.l.s4 1934713408
    %v1486 = vunpack.c.0.s8 %v1485
    %v1487 = vlaneseq
    %v1488 = vshrl.u32 %v1487, 7
    %v1489 = vsub.s32 %v1486, %v1488
    %v1490 = vrot.slane %v1482, %v1489
    %v1492 = vunpack.c.l.s4 1934713408
    %v1493 = vunpack.c.0.s8 %v1492
    %v1494 = vlaneseq
    %v1495 = vshrl.u32 %v1494, 7
    %v1496 = vsub.s32 %v1493, %v1495
    %v1497 = vrot.slane %v1483, %v1496
    %v1498 = vcombine.low %v1458, %v1458
    %v1499 = vcombine.high %v1458, %v1458
    %v1501 = vunpack.c.l.s4 1934713408
    %v1502 = vunpack.c.0.s8 %v1501
    %v1503 = vlaneseq
    %v1504 = vshrl.u32 %v1503, 7
    %v1505 = vsub.s32 %v1502, %v1504
    %v1506 = vrot.slane %v1498, %v1505
    %v1508 = vunpack.c.l.s4 1934713408
    %v1509 = vunpack.c.0.s8 %v1508
    %v1510 = vlaneseq
    %v1511 = vshrl.u32 %v1510, 7
    %v1512 = vsub.s32 %v1509, %v1511
    %v1513 = vrot.slane %v1499, %v1512
    %v1514 = vcombine.low %v1465, %v1465
    %v1515 = vcombine.high %v1465, %v1465
    %v1517 = vunpack.c.l.s4 1934713408
    %v1518 = vunpack.c.0.s8 %v1517
    %v1519 = vlaneseq
    %v1520 = vshrl.u32 %v1519, 7
    %v1521 = vsub.s32 %v1518, %v1520
    %v1522 = vrot.slane %v1514, %v1521
    %v1524 = vunpack.c.l.s4 1934713408
    %v1525 = vunpack.c.0.s8 %v1524
    %v1526 = vlaneseq
    %v1527 = vshrl.u32 %v1526, 7
    %v1528 = vsub.s32 %v1525, %v1527
    %v1529 = vrot.slane %v1515, %v1528
    %v1530 = vcombine.low %v1474, %v1506
    %v1531 = vcombine.high %v1474, %v1506
    %v1532 = vcombine.low %v1481, %v1513
    %v1533 = vcombine.high %v1481, %v1513
    %v1534 = vcombine.low %v1490, %v1522
    %v1535 = vcombine.high %v1490, %v1522
    %v1536 = vcombine.low %v1497, %v1529
    %v1537 = vcombine.high %v1497, %v1529
    %v1538 = vcombine.low %v336, %v343
    %v1539 = vcombine.high %v336, %v343
    %v1541 = vunpack.c.l.s4 1983009808
    %v1542 = vunpack.c.0.s8 %v1541
    %v1543 = vlaneseq
    %v1544 = vshrl.u32 %v1543, 7
    %v1545 = vsub.s32 %v1542, %v1544
    %v1546 = vrot.slane %v1538, %v1545
    %v1548 = vunpack.c.l.s4 1983009808
    %v1549 = vunpack.c.0.s8 %v1548
    %v1550 = vlaneseq
    %v1551 = vshrl.u32 %v1550, 7
    %v1552 = vsub.s32 %v1549, %v1551
    %v1553 = vrot.slane %v1539, %v1552
    %v1554 = vcombine.low %v350, %v357
    %v1555 = vcombine.high %v350, %v357
    %v1557 = vunpack.c.l.s4 1983009808
    %v1558 = vunpack.c.0.s8 %v1557
    %v1559 = vlaneseq
    %v1560 = vshrl.u32 %v1559, 7
    %v1561 = vsub.s32 %v1558, %v1560
    %v1562 = vrot.slane %v1554, %v1561
    %v1564 = vunpack.c.l.s4 1983009808
    %v1565 = vunpack.c.0.s8 %v1564
    %v1566 = vlaneseq
    %v1567 = vshrl.u32 %v1566, 7
    %v1568 = vsub.s32 %v1565, %v1567
    %v1569 = vrot.slane %v1555, %v1568
    %v1570 = vcombine.low %v1546, %v1546
    %v1571 = vcombine.high %v1546, %v1546
    %v1573 = vunpack.c.l.s4 1934713408
    %v1574 = vunpack.c.0.s8 %v1573
    %v1575 = vlaneseq
    %v1576 = vshrl.u32 %v1575, 7
    %v1577 = vsub.s32 %v1574, %v1576
    %v1578 = vrot.slane %v1570, %v1577
    %v1580 = vunpack.c.l.s4 1934713408
    %v1581 = vunpack.c.0.s8 %v1580
    %v1582 = vlaneseq
    %v1583 = vshrl.u32 %v1582, 7
    %v1584 = vsub.s32 %v1581, %v1583
    %v1585 = vrot.slane %v1571, %v1584
    %v1586 = vcombine.low %v1553, %v1553
    %v1587 = vcombine.high %v1553, %v1553
    %v1589 = vunpack.c.l.s4 1934713408
    %v1590 = vunpack.c.0.s8 %v1589
    %v1591 = vlaneseq
    %v1592 = vshrl.u32 %v1591, 7
    %v1593 = vsub.s32 %v1590, %v1592
    %v1594 = vrot.slane %v1586, %v1593
    %v1596 = vunpack.c.l.s4 1934713408
    %v1597 = vunpack.c.0.s8 %v1596
    %v1598 = vlaneseq
    %v1599 = vshrl.u32 %v1598, 7
    %v1600 = vsub.s32 %v1597, %v1599
    %v1601 = vrot.slane %v1587, %v1600
    %v1602 = vcombine.low %v1562, %v1562
    %v1603 = vcombine.high %v1562, %v1562
    %v1605 = vunpack.c.l.s4 1934713408
    %v1606 = vunpack.c.0.s8 %v1605
    %v1607 = vlaneseq
    %v1608 = vshrl.u32 %v1607, 7
    %v1609 = vsub.s32 %v1606, %v1608
    %v1610 = vrot.slane %v1602, %v1609
    %v1612 = vunpack.c.l.s4 1934713408
    %v1613 = vunpack.c.0.s8 %v1612
    %v1614 = vlaneseq
    %v1615 = vshrl.u32 %v1614, 7
    %v1616 = vsub.s32 %v1613, %v1615
    %v1617 = vrot.slane %v1603, %v1616
    %v1618 = vcombine.low %v1569, %v1569
    %v1619 = vcombine.high %v1569, %v1569
    %v1621 = vunpack.c.l.s4 1934713408
    %v1622 = vunpack.c.0.s8 %v1621
    %v1623 = vlaneseq
    %v1624 = vshrl.u32 %v1623, 7
    %v1625 = vsub.s32 %v1622, %v1624
    %v1626 = vrot.slane %v1618, %v1625
    %v1628 = vunpack.c.l.s4 1934713408
    %v1629 = vunpack.c.0.s8 %v1628
    %v1630 = vlaneseq
    %v1631 = vshrl.u32 %v1630, 7
    %v1632 = vsub.s32 %v1629, %v1631
    %v1633 = vrot.slane %v1619, %v1632
    %v1634 = vcombine.low %v1578, %v1610
    %v1635 = vcombine.high %v1578, %v1610
    %v1636 = vcombine.low %v1585, %v1617
    %v1637 = vcombine.high %v1585, %v1617
    %v1638 = vcombine.low %v1594, %v1626
    %v1639 = vcombine.high %v1594, %v1626
    %v1640 = vcombine.low %v1601, %v1633
    %v1641 = vcombine.high %v1601, %v1633
    %v1642 = vcombine.low %v364, %v371
    %v1643 = vcombine.high %v364, %v371
    %v1645 = vunpack.c.l.s4 1983009808
    %v1646 = vunpack.c.0.s8 %v1645
    %v1647 = vlaneseq
    %v1648 = vshrl.u32 %v1647, 7
    %v1649 = vsub.s32 %v1646, %v1648
    %v1650 = vrot.slane %v1642, %v1649
    %v1652 = vunpack.c.l.s4 1983009808
    %v1653 = vunpack.c.0.s8 %v1652
    %v1654 = vlaneseq
    %v1655 = vshrl.u32 %v1654, 7
    %v1656 = vsub.s32 %v1653, %v1655
    %v1657 = vrot.slane %v1643, %v1656
    %v1658 = vcombine.low %v378, %v385
    %v1659 = vcombine.high %v378, %v385
    %v1661 = vunpack.c.l.s4 1983009808
    %v1662 = vunpack.c.0.s8 %v1661
    %v1663 = vlaneseq
    %v1664 = vshrl.u32 %v1663, 7
    %v1665 = vsub.s32 %v1662, %v1664
    %v1666 = vrot.slane %v1658, %v1665
    %v1668 = vunpack.c.l.s4 1983009808
    %v1669 = vunpack.c.0.s8 %v1668
    %v1670 = vlaneseq
    %v1671 = vshrl.u32 %v1670, 7
    %v1672 = vsub.s32 %v1669, %v1671
    %v1673 = vrot.slane %v1659, %v1672
    %v1674 = vcombine.low %v1650, %v1650
    %v1675 = vcombine.high %v1650, %v1650
    %v1677 = vunpack.c.l.s4 1934713408
    %v1678 = vunpack.c.0.s8 %v1677
    %v1679 = vlaneseq
    %v1680 = vshrl.u32 %v1679, 7
    %v1681 = vsub.s32 %v1678, %v1680
    %v1682 = vrot.slane %v1674, %v1681
    %v1684 = vunpack.c.l.s4 1934713408
    %v1685 = vunpack.c.0.s8 %v1684
    %v1686 = vlaneseq
    %v1687 = vshrl.u32 %v1686, 7
    %v1688 = vsub.s32 %v1685, %v1687
    %v1689 = vrot.slane %v1675, %v1688
    %v1690 = vcombine.low %v1657, %v1657
    %v1691 = vcombine.high %v1657, %v1657
    %v1693 = vunpack.c.l.s4 1934713408
    %v1694 = vunpack.c.0.s8 %v1693
    %v1695 = vlaneseq
    %v1696 = vshrl.u32 %v1695, 7
    %v1697 = vsub.s32 %v1694, %v1696
    %v1698 = vrot.slane %v1690, %v1697
    %v1700 = vunpack.c.l.s4 1934713408
    %v1701 = vunpack.c.0.s8 %v1700
    %v1702 = vlaneseq
    %v1703 = vshrl.u32 %v1702, 7
    %v1704 = vsub.s32 %v1701, %v1703
    %v1705 = vrot.slane %v1691, %v1704
    %v1706 = vcombine.low %v1666, %v1666
    %v1707 = vcombine.high %v1666, %v1666
    %v1709 = vunpack.c.l.s4 1934713408
    %v1710 = vunpack.c.0.s8 %v1709
    %v1711 = vlaneseq
    %v1712 = vshrl.u32 %v1711, 7
    %v1713 = vsub.s32 %v1710, %v1712
    %v1714 = vrot.slane %v1706, %v1713
    %v1716 = vunpack.c.l.s4 1934713408
    %v1717 = vunpack.c.0.s8 %v1716
    %v1718 = vlaneseq
    %v1719 = vshrl.u32 %v1718, 7
    %v1720 = vsub.s32 %v1717, %v1719
    %v1721 = vrot.slane %v1707, %v1720
    %v1722 = vcombine.low %v1673, %v1673
    %v1723 = vcombine.high %v1673, %v1673
    %v1725 = vunpack.c.l.s4 1934713408
    %v1726 = vunpack.c.0.s8 %v1725
    %v1727 = vlaneseq
    %v1728 = vshrl.u32 %v1727, 7
    %v1729 = vsub.s32 %v1726, %v1728
    %v1730 = vrot.slane %v1722, %v1729
    %v1732 = vunpack.c.l.s4 1934713408
    %v1733 = vunpack.c.0.s8 %v1732
    %v1734 = vlaneseq
    %v1735 = vshrl.u32 %v1734, 7
    %v1736 = vsub.s32 %v1733, %v1735
    %v1737 = vrot.slane %v1723, %v1736
    %v1738 = vcombine.low %v1682, %v1714
    %v1739 = vcombine.high %v1682, %v1714
    %v1740 = vcombine.low %v1689, %v1721
    %v1741 = vcombine.high %v1689, %v1721
    %v1742 = vcombine.low %v1698, %v1730
    %v1743 = vcombine.high %v1698, %v1730
    %v1744 = vcombine.low %v1705, %v1737
    %v1745 = vcombine.high %v1705, %v1737
    %v1746 = vcombine.low %v392, %v399
    %v1747 = vcombine.high %v392, %v399
    %v1749 = vunpack.c.l.s4 1983009808
    %v1750 = vunpack.c.0.s8 %v1749
    %v1751 = vlaneseq
    %v1752 = vshrl.u32 %v1751, 7
    %v1753 = vsub.s32 %v1750, %v1752
    %v1754 = vrot.slane %v1746, %v1753
    %v1756 = vunpack.c.l.s4 1983009808
    %v1757 = vunpack.c.0.s8 %v1756
    %v1758 = vlaneseq
    %v1759 = vshrl.u32 %v1758, 7
    %v1760 = vsub.s32 %v1757, %v1759
    %v1761 = vrot.slane %v1747, %v1760
    %v1762 = vcombine.low %v406, %v413
    %v1763 = vcombine.high %v406, %v413
    %v1765 = vunpack.c.l.s4 1983009808
    %v1766 = vunpack.c.0.s8 %v1765
    %v1767 = vlaneseq
    %v1768 = vshrl.u32 %v1767, 7
    %v1769 = vsub.s32 %v1766, %v1768
    %v1770 = vrot.slane %v1762, %v1769
    %v1772 = vunpack.c.l.s4 1983009808
    %v1773 = vunpack.c.0.s8 %v1772
    %v1774 = vlaneseq
    %v1775 = vshrl.u32 %v1774, 7
    %v1776 = vsub.s32 %v1773, %v1775
    %v1777 = vrot.slane %v1763, %v1776
    %v1778 = vcombine.low %v1754, %v1754
    %v1779 = vcombine.high %v1754, %v1754
    %v1781 = vunpack.c.l.s4 1934713408
    %v1782 = vunpack.c.0.s8 %v1781
    %v1783 = vlaneseq
    %v1784 = vshrl.u32 %v1783, 7
    %v1785 = vsub.s32 %v1782, %v1784
    %v1786 = vrot.slane %v1778, %v1785
    %v1788 = vunpack.c.l.s4 1934713408
    %v1789 = vunpack.c.0.s8 %v1788
    %v1790 = vlaneseq
    %v1791 = vshrl.u32 %v1790, 7
    %v1792 = vsub.s32 %v1789, %v1791
    %v1793 = vrot.slane %v1779, %v1792
    %v1794 = vcombine.low %v1761, %v1761
    %v1795 = vcombine.high %v1761, %v1761
    %v1797 = vunpack.c.l.s4 1934713408
    %v1798 = vunpack.c.0.s8 %v1797
    %v1799 = vlaneseq
    %v1800 = vshrl.u32 %v1799, 7
    %v1801 = vsub.s32 %v1798, %v1800
    %v1802 = vrot.slane %v1794, %v1801
    %v1804 = vunpack.c.l.s4 1934713408
    %v1805 = vunpack.c.0.s8 %v1804
    %v1806 = vlaneseq
    %v1807 = vshrl.u32 %v1806, 7
    %v1808 = vsub.s32 %v1805, %v1807
    %v1809 = vrot.slane %v1795, %v1808
    %v1810 = vcombine.low %v1770, %v1770
    %v1811 = vcombine.high %v1770, %v1770
    %v1813 = vunpack.c.l.s4 1934713408
    %v1814 = vunpack.c.0.s8 %v1813
    %v1815 = vlaneseq
    %v1816 = vshrl.u32 %v1815, 7
    %v1817 = vsub.s32 %v1814, %v1816
    %v1818 = vrot.slane %v1810, %v1817
    %v1820 = vunpack.c.l.s4 1934713408
    %v1821 = vunpack.c.0.s8 %v1820
    %v1822 = vlaneseq
    %v1823 = vshrl.u32 %v1822, 7
    %v1824 = vsub.s32 %v1821, %v1823
    %v1825 = vrot.slane %v1811, %v1824
    %v1826 = vcombine.low %v1777, %v1777
    %v1827 = vcombine.high %v1777, %v1777
    %v1829 = vunpack.c.l.s4 1934713408
    %v1830 = vunpack.c.0.s8 %v1829
    %v1831 = vlaneseq
    %v1832 = vshrl.u32 %v1831, 7
    %v1833 = vsub.s32 %v1830, %v1832
    %v1834 = vrot.slane %v1826, %v1833
    %v1836 = vunpack.c.l.s4 1934713408
    %v1837 = vunpack.c.0.s8 %v1836
    %v1838 = vlaneseq
    %v1839 = vshrl.u32 %v1838, 7
    %v1840 = vsub.s32 %v1837, %v1839
    %v1841 = vrot.slane %v1827, %v1840
    %v1842 = vcombine.low %v1786, %v1818
    %v1843 = vcombine.high %v1786, %v1818
    %v1844 = vcombine.low %v1793, %v1825
    %v1845 = vcombine.high %v1793, %v1825
    %v1846 = vcombine.low %v1802, %v1834
    %v1847 = vcombine.high %v1802, %v1834
    %v1848 = vcombine.low %v1809, %v1841
    %v1849 = vcombine.high %v1809, %v1841
    %v1850 = vcombine.low %v420, %v427
    %v1851 = vcombine.high %v420, %v427
    %v1853 = vunpack.c.l.s4 1983009808
    %v1854 = vunpack.c.0.s8 %v1853
    %v1855 = vlaneseq
    %v1856 = vshrl.u32 %v1855, 7
    %v1857 = vsub.s32 %v1854, %v1856
    %v1858 = vrot.slane %v1850, %v1857
    %v1860 = vunpack.c.l.s4 1983009808
    %v1861 = vunpack.c.0.s8 %v1860
    %v1862 = vlaneseq
    %v1863 = vshrl.u32 %v1862, 7
    %v1864 = vsub.s32 %v1861, %v1863
    %v1865 = vrot.slane %v1851, %v1864
    %v1866 = vcombine.low %v434, %v441
    %v1867 = vcombine.high %v434, %v441
    %v1869 = vunpack.c.l.s4 1983009808
    %v1870 = vunpack.c.0.s8 %v1869
    %v1871 = vlaneseq
    %v1872 = vshrl.u32 %v1871, 7
    %v1873 = vsub.s32 %v1870, %v1872
    %v1874 = vrot.slane %v1866, %v1873
    %v1876 = vunpack.c.l.s4 1983009808
    %v1877 = vunpack.c.0.s8 %v1876
    %v1878 = vlaneseq
    %v1879 = vshrl.u32 %v1878, 7
    %v1880 = vsub.s32 %v1877, %v1879
    %v1881 = vrot.slane %v1867, %v1880
    %v1882 = vcombine.low %v1858, %v1858
    %v1883 = vcombine.high %v1858, %v1858
    %v1885 = vunpack.c.l.s4 1934713408
    %v1886 = vunpack.c.0.s8 %v1885
    %v1887 = vlaneseq
    %v1888 = vshrl.u32 %v1887, 7
    %v1889 = vsub.s32 %v1886, %v1888
    %v1890 = vrot.slane %v1882, %v1889
    %v1892 = vunpack.c.l.s4 1934713408
    %v1893 = vunpack.c.0.s8 %v1892
    %v1894 = vlaneseq
    %v1895 = vshrl.u32 %v1894, 7
    %v1896 = vsub.s32 %v1893, %v1895
    %v1897 = vrot.slane %v1883, %v1896
    %v1898 = vcombine.low %v1865, %v1865
    %v1899 = vcombine.high %v1865, %v1865
    %v1901 = vunpack.c.l.s4 1934713408
    %v1902 = vunpack.c.0.s8 %v1901
    %v1903 = vlaneseq
    %v1904 = vshrl.u32 %v1903, 7
    %v1905 = vsub.s32 %v1902, %v1904
    %v1906 = vrot.slane %v1898, %v1905
    %v1908 = vunpack.c.l.s4 1934713408
    %v1909 = vunpack.c.0.s8 %v1908
    %v1910 = vlaneseq
    %v1911 = vshrl.u32 %v1910, 7
    %v1912 = vsub.s32 %v1909, %v1911
    %v1913 = vrot.slane %v1899, %v1912
    %v1914 = vcombine.low %v1874, %v1874
    %v1915 = vcombine.high %v1874, %v1874
    %v1917 = vunpack.c.l.s4 1934713408
    %v1918 = vunpack.c.0.s8 %v1917
    %v1919 = vlaneseq
    %v1920 = vshrl.u32 %v1919, 7
    %v1921 = vsub.s32 %v1918, %v1920
    %v1922 = vrot.slane %v1914, %v1921
    %v1924 = vunpack.c.l.s4 1934713408
    %v1925 = vunpack.c.0.s8 %v1924
    %v1926 = vlaneseq
    %v1927 = vshrl.u32 %v1926, 7
    %v1928 = vsub.s32 %v1925, %v1927
    %v1929 = vrot.slane %v1915, %v1928
    %v1930 = vcombine.low %v1881, %v1881
    %v1931 = vcombine.high %v1881, %v1881
    %v1933 = vunpack.c.l.s4 1934713408
    %v1934 = vunpack.c.0.s8 %v1933
    %v1935 = vlaneseq
    %v1936 = vshrl.u32 %v1935, 7
    %v1937 = vsub.s32 %v1934, %v1936
    %v1938 = vrot.slane %v1930, %v1937
    %v1940 = vunpack.c.l.s4 1934713408
    %v1941 = vunpack.c.0.s8 %v1940
    %v1942 = vlaneseq
    %v1943 = vshrl.u32 %v1942, 7
    %v1944 = vsub.s32 %v1941, %v1943
    %v1945 = vrot.slane %v1931, %v1944
    %v1946 = vcombine.low %v1890, %v1922
    %v1947 = vcombine.high %v1890, %v1922
    %v1948 = vcombine.low %v1897, %v1929
    %v1949 = vcombine.high %v1897, %v1929
    %v1950 = vcombine.low %v1906, %v1938
    %v1951 = vcombine.high %v1906, %v1938
    %v1952 = vcombine.low %v1913, %v1945
    %v1953 = vcombine.high %v1913, %v1945
    %v1954 = vcombine.low %v448, %v455
    %v1955 = vcombine.high %v448, %v455
    %v1957 = vunpack.c.l.s4 1983009808
    %v1958 = vunpack.c.0.s8 %v1957
    %v1959 = vlaneseq
    %v1960 = vshrl.u32 %v1959, 7
    %v1961 = vsub.s32 %v1958, %v1960
    %v1962 = vrot.slane %v1954, %v1961
    %v1964 = vunpack.c.l.s4 1983009808
    %v1965 = vunpack.c.0.s8 %v1964
    %v1966 = vlaneseq
    %v1967 = vshrl.u32 %v1966, 7
    %v1968 = vsub.s32 %v1965, %v1967
    %v1969 = vrot.slane %v1955, %v1968
    %v1970 = vcombine.low %v462, %v469
    %v1971 = vcombine.high %v462, %v469
    %v1973 = vunpack.c.l.s4 1983009808
    %v1974 = vunpack.c.0.s8 %v1973
    %v1975 = vlaneseq
    %v1976 = vshrl.u32 %v1975, 7
    %v1977 = vsub.s32 %v1974, %v1976
    %v1978 = vrot.slane %v1970, %v1977
    %v1980 = vunpack.c.l.s4 1983009808
    %v1981 = vunpack.c.0.s8 %v1980
    %v1982 = vlaneseq
    %v1983 = vshrl.u32 %v1982, 7
    %v1984 = vsub.s32 %v1981, %v1983
    %v1985 = vrot.slane %v1971, %v1984
    %v1986 = vcombine.low %v1962, %v1962
    %v1987 = vcombine.high %v1962, %v1962
    %v1989 = vunpack.c.l.s4 1934713408
    %v1990 = vunpack.c.0.s8 %v1989
    %v1991 = vlaneseq
    %v1992 = vshrl.u32 %v1991, 7
    %v1993 = vsub.s32 %v1990, %v1992
    %v1994 = vrot.slane %v1986, %v1993
    %v1996 = vunpack.c.l.s4 1934713408
    %v1997 = vunpack.c.0.s8 %v1996
    %v1998 = vlaneseq
    %v1999 = vshrl.u32 %v1998, 7
    %v2000 = vsub.s32 %v1997, %v1999
    %v2001 = vrot.slane %v1987, %v2000
    %v2002 = vcombine.low %v1969, %v1969
    %v2003 = vcombine.high %v1969, %v1969
    %v2005 = vunpack.c.l.s4 1934713408
    %v2006 = vunpack.c.0.s8 %v2005
    %v2007 = vlaneseq
    %v2008 = vshrl.u32 %v2007, 7
    %v2009 = vsub.s32 %v2006, %v2008
    %v2010 = vrot.slane %v2002, %v2009
    %v2012 = vunpack.c.l.s4 1934713408
    %v2013 = vunpack.c.0.s8 %v2012
    %v2014 = vlaneseq
    %v2015 = vshrl.u32 %v2014, 7
    %v2016 = vsub.s32 %v2013, %v2015
    %v2017 = vrot.slane %v2003, %v2016
    %v2018 = vcombine.low %v1978, %v1978
    %v2019 = vcombine.high %v1978, %v1978
    %v2021 = vunpack.c.l.s4 1934713408
    %v2022 = vunpack.c.0.s8 %v2021
    %v2023 = vlaneseq
    %v2024 = vshrl.u32 %v2023, 7
    %v2025 = vsub.s32 %v2022, %v2024
    %v2026 = vrot.slane %v2018, %v2025
    %v2028 = vunpack.c.l.s4 1934713408
    %v2029 = vunpack.c.0.s8 %v2028
    %v2030 = vlaneseq
    %v2031 = vshrl.u32 %v2030, 7
    %v2032 = vsub.s32 %v2029, %v2031
    %v2033 = vrot.slane %v2019, %v2032
    %v2034 = vcombine.low %v1985, %v1985
    %v2035 = vcombine.high %v1985, %v1985
    %v2037 = vunpack.c.l.s4 1934713408
    %v2038 = vunpack.c.0.s8 %v2037
    %v2039 = vlaneseq
    %v2040 = vshrl.u32 %v2039, 7
    %v2041 = vsub.s32 %v2038, %v2040
    %v2042 = vrot.slane %v2034, %v2041
    %v2044 = vunpack.c.l.s4 1934713408
    %v2045 = vunpack.c.0.s8 %v2044
    %v2046 = vlaneseq
    %v2047 = vshrl.u32 %v2046, 7
    %v2048 = vsub.s32 %v2045, %v2047
    %v2049 = vrot.slane %v2035, %v2048
    %v2050 = vcombine.low %v1994, %v2026
    %v2051 = vcombine.high %v1994, %v2026
    %v2052 = vcombine.low %v2001, %v2033
    %v2053 = vcombine.high %v2001, %v2033
    %v2054 = vcombine.low %v2010, %v2042
    %v2055 = vcombine.high %v2010, %v2042
    %v2056 = vcombine.low %v2017, %v2049
    %v2057 = vcombine.high %v2017, %v2049
    %v2058 = vcombine.low %v476, %v483
    %v2059 = vcombine.high %v476, %v483
    %v2061 = vunpack.c.l.s4 1983009808
    %v2062 = vunpack.c.0.s8 %v2061
    %v2063 = vlaneseq
    %v2064 = vshrl.u32 %v2063, 7
    %v2065 = vsub.s32 %v2062, %v2064
    %v2066 = vrot.slane %v2058, %v2065
    %v2068 = vunpack.c.l.s4 1983009808
    %v2069 = vunpack.c.0.s8 %v2068
    %v2070 = vlaneseq
    %v2071 = vshrl.u32 %v2070, 7
    %v2072 = vsub.s32 %v2069, %v2071
    %v2073 = vrot.slane %v2059, %v2072
    %v2074 = vcombine.low %v490, %v497
    %v2075 = vcombine.high %v490, %v497
    %v2077 = vunpack.c.l.s4 1983009808
    %v2078 = vunpack.c.0.s8 %v2077
    %v2079 = vlaneseq
    %v2080 = vshrl.u32 %v2079, 7
    %v2081 = vsub.s32 %v2078, %v2080
    %v2082 = vrot.slane %v2074, %v2081
    %v2084 = vunpack.c.l.s4 1983009808
    %v2085 = vunpack.c.0.s8 %v2084
    %v2086 = vlaneseq
    %v2087 = vshrl.u32 %v2086, 7
    %v2088 = vsub.s32 %v2085, %v2087
    %v2089 = vrot.slane %v2075, %v2088
    %v2090 = vcombine.low %v2066, %v2066
    %v2091 = vcombine.high %v2066, %v2066
    %v2093 = vunpack.c.l.s4 1934713408
    %v2094 = vunpack.c.0.s8 %v2093
    %v2095 = vlaneseq
    %v2096 = vshrl.u32 %v2095, 7
    %v2097 = vsub.s32 %v2094, %v2096
    %v2098 = vrot.slane %v2090, %v2097
    %v2100 = vunpack.c.l.s4 1934713408
    %v2101 = vunpack.c.0.s8 %v2100
    %v2102 = vlaneseq
    %v2103 = vshrl.u32 %v2102, 7
    %v2104 = vsub.s32 %v2101, %v2103
    %v2105 = vrot.slane %v2091, %v2104
    %v2106 = vcombine.low %v2073, %v2073
    %v2107 = vcombine.high %v2073, %v2073
    %v2109 = vunpack.c.l.s4 1934713408
    %v2110 = vunpack.c.0.s8 %v2109
    %v2111 = vlaneseq
    %v2112 = vshrl.u32 %v2111, 7
    %v2113 = vsub.s32 %v2110, %v2112
    %v2114 = vrot.slane %v2106, %v2113
    %v2116 = vunpack.c.l.s4 1934713408
    %v2117 = vunpack.c.0.s8 %v2116
    %v2118 = vlaneseq
    %v2119 = vshrl.u32 %v2118, 7
    %v2120 = vsub.s32 %v2117, %v2119
    %v2121 = vrot.slane %v2107, %v2120
    %v2122 = vcombine.low %v2082, %v2082
    %v2123 = vcombine.high %v2082, %v2082
    %v2125 = vunpack.c.l.s4 1934713408
    %v2126 = vunpack.c.0.s8 %v2125
    %v2127 = vlaneseq
    %v2128 = vshrl.u32 %v2127, 7
    %v2129 = vsub.s32 %v2126, %v2128
    %v2130 = vrot.slane %v2122, %v2129
    %v2132 = vunpack.c.l.s4 1934713408
    %v2133 = vunpack.c.0.s8 %v2132
    %v2134 = vlaneseq
    %v2135 = vshrl.u32 %v2134, 7
    %v2136 = vsub.s32 %v2133, %v2135
    %v2137 = vrot.slane %v2123, %v2136
    %v2138 = vcombine.low %v2089, %v2089
    %v2139 = vcombine.high %v2089, %v2089
    %v2141 = vunpack.c.l.s4 1934713408
    %v2142 = vunpack.c.0.s8 %v2141
    %v2143 = vlaneseq
    %v2144 = vshrl.u32 %v2143, 7
    %v2145 = vsub.s32 %v2142, %v2144
    %v2146 = vrot.slane %v2138, %v2145
    %v2148 = vunpack.c.l.s4 1934713408
    %v2149 = vunpack.c.0.s8 %v2148
    %v2150 = vlaneseq
    %v2151 = vshrl.u32 %v2150, 7
    %v2152 = vsub.s32 %v2149, %v2151
    %v2153 = vrot.slane %v2139, %v2152
    %v2154 = vcombine.low %v2098, %v2130
    %v2155 = vcombine.high %v2098, %v2130
    %v2156 = vcombine.low %v2105, %v2137
    %v2157 = vcombine.high %v2105, %v2137
    %v2158 = vcombine.low %v2114, %v2146
    %v2159 = vcombine.high %v2114, %v2146
    %v2160 = vcombine.low %v2121, %v2153
    %v2161 = vcombine.high %v2121, %v2153
    %2178 = vrot.lane.b32.xlu0 %v595, 2
    %v2179 = vpop.permute.xlu0 %2178
    %2180 = vrot.lane.b32.xlu0 %v699, 2
    %v2181 = vpop.permute.xlu0 %2180
    %2182 = vrot.lane.b32.xlu0 %v803, 2
    %v2183 = vpop.permute.xlu0 %2182
    %2184 = vrot.lane.b32.xlu0 %v907, 2
    %v2185 = vpop.permute.xlu0 %2184
    %2186 = vrot.lane.b32.xlu0 %v1011, 2
    %v2187 = vpop.permute.xlu0 %2186
    %2188 = vrot.lane.b32.xlu0 %v1115, 2
    %v2189 = vpop.permute.xlu0 %2188
    %2190 = vrot.lane.b32.xlu0 %v1219, 2
    %v2191 = vpop.permute.xlu0 %2190
    %2192 = vrot.lane.b32.xlu0 %v1323, 2
    %v2193 = vpop.permute.xlu0 %2192
    %2194 = vrot.lane.b32.xlu0 %v1427, 2
    %v2195 = vpop.permute.xlu0 %2194
    %2196 = vrot.lane.b32.xlu0 %v1531, 2
    %v2197 = vpop.permute.xlu0 %2196
    %2198 = vrot.lane.b32.xlu0 %v1635, 2
    %v2199 = vpop.permute.xlu0 %2198
    %2200 = vrot.lane.b32.xlu0 %v1739, 2
    %v2201 = vpop.permute.xlu0 %2200
    %2202 = vrot.lane.b32.xlu0 %v1843, 2
    %v2203 = vpop.permute.xlu0 %2202
    %2204 = vrot.lane.b32.xlu0 %v1947, 2
    %v2205 = vpop.permute.xlu0 %2204
    %2206 = vrot.lane.b32.xlu0 %v2051, 2
    %v2207 = vpop.permute.xlu0 %2206
    %2208 = vrot.lane.b32.xlu0 %v2155, 2
    %v2209 = vpop.permute.xlu0 %2208
    %2242 = vrot.lane.b32.xlu0 %v596, 4
    %v2243 = vpop.permute.xlu0 %2242
    %2244 = vrot.lane.b32.xlu0 %v700, 4
    %v2245 = vpop.permute.xlu0 %2244
    %2246 = vrot.lane.b32.xlu0 %v804, 4
    %v2247 = vpop.permute.xlu0 %2246
    %2248 = vrot.lane.b32.xlu0 %v908, 4
    %v2249 = vpop.permute.xlu0 %2248
    %2250 = vrot.lane.b32.xlu0 %v1012, 4
    %v2251 = vpop.permute.xlu0 %2250
    %2252 = vrot.lane.b32.xlu0 %v1116, 4
    %v2253 = vpop.permute.xlu0 %2252
    %2254 = vrot.lane.b32.xlu0 %v1220, 4
    %v2255 = vpop.permute.xlu0 %2254
    %2256 = vrot.lane.b32.xlu0 %v1324, 4
    %v2257 = vpop.permute.xlu0 %2256
    %2258 = vrot.lane.b32.xlu0 %v1428, 4
    %v2259 = vpop.permute.xlu0 %2258
    %2260 = vrot.lane.b32.xlu0 %v1532, 4
    %v2261 = vpop.permute.xlu0 %2260
    %2262 = vrot.lane.b32.xlu0 %v1636, 4
    %v2263 = vpop.permute.xlu0 %2262
    %2264 = vrot.lane.b32.xlu0 %v1740, 4
    %v2265 = vpop.permute.xlu0 %2264
    %2266 = vrot.lane.b32.xlu0 %v1844, 4
    %v2267 = vpop.permute.xlu0 %2266
    %2268 = vrot.lane.b32.xlu0 %v1948, 4
    %v2269 = vpop.permute.xlu0 %2268
    %2270 = vrot.lane.b32.xlu0 %v2052, 4
    %v2271 = vpop.permute.xlu0 %2270
    %2272 = vrot.lane.b32.xlu0 %v2156, 4
    %v2273 = vpop.permute.xlu0 %2272
    %2306 = vrot.lane.b32.xlu0 %v597, 6
    %v2307 = vpop.permute.xlu0 %2306
    %2308 = vrot.lane.b32.xlu0 %v701, 6
    %v2309 = vpop.permute.xlu0 %2308
    %2310 = vrot.lane.b32.xlu0 %v805, 6
    %v2311 = vpop.permute.xlu0 %2310
    %2312 = vrot.lane.b32.xlu0 %v909, 6
    %v2313 = vpop.permute.xlu0 %2312
    %2314 = vrot.lane.b32.xlu0 %v1013, 6
    %v2315 = vpop.permute.xlu0 %2314
    %2316 = vrot.lane.b32.xlu0 %v1117, 6
    %v2317 = vpop.permute.xlu0 %2316
    %2318 = vrot.lane.b32.xlu0 %v1221, 6
    %v2319 = vpop.permute.xlu0 %2318
    %2320 = vrot.lane.b32.xlu0 %v1325, 6
    %v2321 = vpop.permute.xlu0 %2320
    %2322 = vrot.lane.b32.xlu0 %v1429, 6
    %v2323 = vpop.permute.xlu0 %2322
    %2324 = vrot.lane.b32.xlu0 %v1533, 6
    %v2325 = vpop.permute.xlu0 %2324
    %2326 = vrot.lane.b32.xlu0 %v1637, 6
    %v2327 = vpop.permute.xlu0 %2326
    %2328 = vrot.lane.b32.xlu0 %v1741, 6
    %v2329 = vpop.permute.xlu0 %2328
    %2330 = vrot.lane.b32.xlu0 %v1845, 6
    %v2331 = vpop.permute.xlu0 %2330
    %2332 = vrot.lane.b32.xlu0 %v1949, 6
    %v2333 = vpop.permute.xlu0 %2332
    %2334 = vrot.lane.b32.xlu0 %v2053, 6
    %v2335 = vpop.permute.xlu0 %2334
    %2336 = vrot.lane.b32.xlu0 %v2157, 6
    %v2337 = vpop.permute.xlu0 %2336
    %2370 = vrot.lane.b32.xlu0 %v598, 8
    %v2371 = vpop.permute.xlu0 %2370
    %2372 = vrot.lane.b32.xlu0 %v702, 8
    %v2373 = vpop.permute.xlu0 %2372
    %2374 = vrot.lane.b32.xlu0 %v806, 8
    %v2375 = vpop.permute.xlu0 %2374
    %2376 = vrot.lane.b32.xlu0 %v910, 8
    %v2377 = vpop.permute.xlu0 %2376
    %2378 = vrot.lane.b32.xlu0 %v1014, 8
    %v2379 = vpop.permute.xlu0 %2378
    %2380 = vrot.lane.b32.xlu0 %v1118, 8
    %v2381 = vpop.permute.xlu0 %2380
    %2382 = vrot.lane.b32.xlu0 %v1222, 8
    %v2383 = vpop.permute.xlu0 %2382
    %2384 = vrot.lane.b32.xlu0 %v1326, 8
    %v2385 = vpop.permute.xlu0 %2384
    %2386 = vrot.lane.b32.xlu0 %v1430, 8
    %v2387 = vpop.permute.xlu0 %2386
    %2388 = vrot.lane.b32.xlu0 %v1534, 8
    %v2389 = vpop.permute.xlu0 %2388
    %2390 = vrot.lane.b32.xlu0 %v1638, 8
    %v2391 = vpop.permute.xlu0 %2390
    %2392 = vrot.lane.b32.xlu0 %v1742, 8
    %v2393 = vpop.permute.xlu0 %2392
    %2394 = vrot.lane.b32.xlu0 %v1846, 8
    %v2395 = vpop.permute.xlu0 %2394
    %2396 = vrot.lane.b32.xlu0 %v1950, 8
    %v2397 = vpop.permute.xlu0 %2396
    %2398 = vrot.lane.b32.xlu0 %v2054, 8
    %v2399 = vpop.permute.xlu0 %2398
    %2400 = vrot.lane.b32.xlu0 %v2158, 8
    %v2401 = vpop.permute.xlu0 %2400
    %2434 = vrot.lane.b32.xlu0 %v599, 10
    %v2435 = vpop.permute.xlu0 %2434
    %2436 = vrot.lane.b32.xlu0 %v703, 10
    %v2437 = vpop.permute.xlu0 %2436
    %2438 = vrot.lane.b32.xlu0 %v807, 10
    %v2439 = vpop.permute.xlu0 %2438
    %2440 = vrot.lane.b32.xlu0 %v911, 10
    %v2441 = vpop.permute.xlu0 %2440
    %2442 = vrot.lane.b32.xlu0 %v1015, 10
    %v2443 = vpop.permute.xlu0 %2442
    %2444 = vrot.lane.b32.xlu0 %v1119, 10
    %v2445 = vpop.permute.xlu0 %2444
    %2446 = vrot.lane.b32.xlu0 %v1223, 10
    %v2447 = vpop.permute.xlu0 %2446
    %2448 = vrot.lane.b32.xlu0 %v1327, 10
    %v2449 = vpop.permute.xlu0 %2448
    %2450 = vrot.lane.b32.xlu0 %v1431, 10
    %v2451 = vpop.permute.xlu0 %2450
    %2452 = vrot.lane.b32.xlu0 %v1535, 10
    %v2453 = vpop.permute.xlu0 %2452
    %2454 = vrot.lane.b32.xlu0 %v1639, 10
    %v2455 = vpop.permute.xlu0 %2454
    %2456 = vrot.lane.b32.xlu0 %v1743, 10
    %v2457 = vpop.permute.xlu0 %2456
    %2458 = vrot.lane.b32.xlu0 %v1847, 10
    %v2459 = vpop.permute.xlu0 %2458
    %2460 = vrot.lane.b32.xlu0 %v1951, 10
    %v2461 = vpop.permute.xlu0 %2460
    %2462 = vrot.lane.b32.xlu0 %v2055, 10
    %v2463 = vpop.permute.xlu0 %2462
    %2464 = vrot.lane.b32.xlu0 %v2159, 10
    %v2465 = vpop.permute.xlu0 %2464
    %2498 = vrot.lane.b32.xlu0 %v600, 12
    %v2499 = vpop.permute.xlu0 %2498
    %2500 = vrot.lane.b32.xlu0 %v704, 12
    %v2501 = vpop.permute.xlu0 %2500
    %2502 = vrot.lane.b32.xlu0 %v808, 12
    %v2503 = vpop.permute.xlu0 %2502
    %2504 = vrot.lane.b32.xlu0 %v912, 12
    %v2505 = vpop.permute.xlu0 %2504
    %2506 = vrot.lane.b32.xlu0 %v1016, 12
    %v2507 = vpop.permute.xlu0 %2506
    %2508 = vrot.lane.b32.xlu0 %v1120, 12
    %v2509 = vpop.permute.xlu0 %2508
    %2510 = vrot.lane.b32.xlu0 %v1224, 12
    %v2511 = vpop.permute.xlu0 %2510
    %2512 = vrot.lane.b32.xlu0 %v1328, 12
    %v2513 = vpop.permute.xlu0 %2512
    %2514 = vrot.lane.b32.xlu0 %v1432, 12
    %v2515 = vpop.permute.xlu0 %2514
    %2516 = vrot.lane.b32.xlu0 %v1536, 12
    %v2517 = vpop.permute.xlu0 %2516
    %2518 = vrot.lane.b32.xlu0 %v1640, 12
    %v2519 = vpop.permute.xlu0 %2518
    %2520 = vrot.lane.b32.xlu0 %v1744, 12
    %v2521 = vpop.permute.xlu0 %2520
    %2522 = vrot.lane.b32.xlu0 %v1848, 12
    %v2523 = vpop.permute.xlu0 %2522
    %2524 = vrot.lane.b32.xlu0 %v1952, 12
    %v2525 = vpop.permute.xlu0 %2524
    %2526 = vrot.lane.b32.xlu0 %v2056, 12
    %v2527 = vpop.permute.xlu0 %2526
    %2528 = vrot.lane.b32.xlu0 %v2160, 12
    %v2529 = vpop.permute.xlu0 %2528
    %2562 = vrot.lane.b32.xlu0 %v601, 14
    %v2563 = vpop.permute.xlu0 %2562
    %2564 = vrot.lane.b32.xlu0 %v705, 14
    %v2565 = vpop.permute.xlu0 %2564
    %2566 = vrot.lane.b32.xlu0 %v809, 14
    %v2567 = vpop.permute.xlu0 %2566
    %2568 = vrot.lane.b32.xlu0 %v913, 14
    %v2569 = vpop.permute.xlu0 %2568
    %2570 = vrot.lane.b32.xlu0 %v1017, 14
    %v2571 = vpop.permute.xlu0 %2570
    %2572 = vrot.lane.b32.xlu0 %v1121, 14
    %v2573 = vpop.permute.xlu0 %2572
    %2574 = vrot.lane.b32.xlu0 %v1225, 14
    %v2575 = vpop.permute.xlu0 %2574
    %2576 = vrot.lane.b32.xlu0 %v1329, 14
    %v2577 = vpop.permute.xlu0 %2576
    %2578 = vrot.lane.b32.xlu0 %v1433, 14
    %v2579 = vpop.permute.xlu0 %2578
    %2580 = vrot.lane.b32.xlu0 %v1537, 14
    %v2581 = vpop.permute.xlu0 %2580
    %2582 = vrot.lane.b32.xlu0 %v1641, 14
    %v2583 = vpop.permute.xlu0 %2582
    %2584 = vrot.lane.b32.xlu0 %v1745, 14
    %v2585 = vpop.permute.xlu0 %2584
    %2586 = vrot.lane.b32.xlu0 %v1849, 14
    %v2587 = vpop.permute.xlu0 %2586
    %2588 = vrot.lane.b32.xlu0 %v1953, 14
    %v2589 = vpop.permute.xlu0 %2588
    %2590 = vrot.lane.b32.xlu0 %v2057, 14
    %v2591 = vpop.permute.xlu0 %2590
    %2592 = vrot.lane.b32.xlu0 %v2161, 14
    %v2593 = vpop.permute.xlu0 %2592
    %vm2610 = vcmask 15360
    %v2611 = vsel %vm2610, %v594, %v2179
    %v2612 = vsel %vm2610, %v698, %v2181
    %v2613 = vsel %vm2610, %v802, %v2183
    %v2614 = vsel %vm2610, %v906, %v2185
    %v2615 = vsel %vm2610, %v1010, %v2187
    %v2616 = vsel %vm2610, %v1114, %v2189
    %v2617 = vsel %vm2610, %v1218, %v2191
    %v2618 = vsel %vm2610, %v1322, %v2193
    %v2619 = vsel %vm2610, %v1426, %v2195
    %v2620 = vsel %vm2610, %v1530, %v2197
    %v2621 = vsel %vm2610, %v1634, %v2199
    %v2622 = vsel %vm2610, %v1738, %v2201
    %v2623 = vsel %vm2610, %v1842, %v2203
    %v2624 = vsel %vm2610, %v1946, %v2205
    %v2625 = vsel %vm2610, %v2050, %v2207
    %v2626 = vsel %vm2610, %v2154, %v2209
    %vm2627 = vcmask 31744
    %v2628 = vsel %vm2627, %v2611, %v2243
    %v2629 = vsel %vm2627, %v2612, %v2245
    %v2630 = vsel %vm2627, %v2613, %v2247
    %v2631 = vsel %vm2627, %v2614, %v2249
    %v2632 = vsel %vm2627, %v2615, %v2251
    %v2633 = vsel %vm2627, %v2616, %v2253
    %v2634 = vsel %vm2627, %v2617, %v2255
    %v2635 = vsel %vm2627, %v2618, %v2257
    %v2636 = vsel %vm2627, %v2619, %v2259
    %v2637 = vsel %vm2627, %v2620, %v2261
    %v2638 = vsel %vm2627, %v2621, %v2263
    %v2639 = vsel %vm2627, %v2622, %v2265
    %v2640 = vsel %vm2627, %v2623, %v2267
    %v2641 = vsel %vm2627, %v2624, %v2269
    %v2642 = vsel %vm2627, %v2625, %v2271
    %v2643 = vsel %vm2627, %v2626, %v2273
    %vm2644 = vcmask 48128
    %v2645 = vsel %vm2644, %v2628, %v2307
    %v2646 = vsel %vm2644, %v2629, %v2309
    %v2647 = vsel %vm2644, %v2630, %v2311
    %v2648 = vsel %vm2644, %v2631, %v2313
    %v2649 = vsel %vm2644, %v2632, %v2315
    %v2650 = vsel %vm2644, %v2633, %v2317
    %v2651 = vsel %vm2644, %v2634, %v2319
    %v2652 = vsel %vm2644, %v2635, %v2321
    %v2653 = vsel %vm2644, %v2636, %v2323
    %v2654 = vsel %vm2644, %v2637, %v2325
    %v2655 = vsel %vm2644, %v2638, %v2327
    %v2656 = vsel %vm2644, %v2639, %v2329
    %v2657 = vsel %vm2644, %v2640, %v2331
    %v2658 = vsel %vm2644, %v2641, %v2333
    %v2659 = vsel %vm2644, %v2642, %v2335
    %v2660 = vsel %vm2644, %v2643, %v2337
    %vm2661 = vcmask 64512
    %v2662 = vsel %vm2661, %v2645, %v2371
    %v2663 = vsel %vm2661, %v2646, %v2373
    %v2664 = vsel %vm2661, %v2647, %v2375
    %v2665 = vsel %vm2661, %v2648, %v2377
    %v2666 = vsel %vm2661, %v2649, %v2379
    %v2667 = vsel %vm2661, %v2650, %v2381
    %v2668 = vsel %vm2661, %v2651, %v2383
    %v2669 = vsel %vm2661, %v2652, %v2385
    %v2670 = vsel %vm2661, %v2653, %v2387
    %v2671 = vsel %vm2661, %v2654, %v2389
    %v2672 = vsel %vm2661, %v2655, %v2391
    %v2673 = vsel %vm2661, %v2656, %v2393
    %v2674 = vsel %vm2661, %v2657, %v2395
    %v2675 = vsel %vm2661, %v2658, %v2397
    %v2676 = vsel %vm2661, %v2659, %v2399
    %v2677 = vsel %vm2661, %v2660, %v2401
    %vm2678 = vcmask 80896
    %v2679 = vsel %vm2678, %v2662, %v2435
    %v2680 = vsel %vm2678, %v2663, %v2437
    %v2681 = vsel %vm2678, %v2664, %v2439
    %v2682 = vsel %vm2678, %v2665, %v2441
    %v2683 = vsel %vm2678, %v2666, %v2443
    %v2684 = vsel %vm2678, %v2667, %v2445
    %v2685 = vsel %vm2678, %v2668, %v2447
    %v2686 = vsel %vm2678, %v2669, %v2449
    %v2687 = vsel %vm2678, %v2670, %v2451
    %v2688 = vsel %vm2678, %v2671, %v2453
    %v2689 = vsel %vm2678, %v2672, %v2455
    %v2690 = vsel %vm2678, %v2673, %v2457
    %v2691 = vsel %vm2678, %v2674, %v2459
    %v2692 = vsel %vm2678, %v2675, %v2461
    %v2693 = vsel %vm2678, %v2676, %v2463
    %v2694 = vsel %vm2678, %v2677, %v2465
    %vm2695 = vcmask 97280
    %v2696 = vsel %vm2695, %v2679, %v2499
    %v2697 = vsel %vm2695, %v2680, %v2501
    %v2698 = vsel %vm2695, %v2681, %v2503
    %v2699 = vsel %vm2695, %v2682, %v2505
    %v2700 = vsel %vm2695, %v2683, %v2507
    %v2701 = vsel %vm2695, %v2684, %v2509
    %v2702 = vsel %vm2695, %v2685, %v2511
    %v2703 = vsel %vm2695, %v2686, %v2513
    %v2704 = vsel %vm2695, %v2687, %v2515
    %v2705 = vsel %vm2695, %v2688, %v2517
    %v2706 = vsel %vm2695, %v2689, %v2519
    %v2707 = vsel %vm2695, %v2690, %v2521
    %v2708 = vsel %vm2695, %v2691, %v2523
    %v2709 = vsel %vm2695, %v2692, %v2525
    %v2710 = vsel %vm2695, %v2693, %v2527
    %v2711 = vsel %vm2695, %v2694, %v2529
    %vm2712 = vcmask 113664
    %v2713 = vsel %vm2712, %v2696, %v2563
    %v2714 = vsel %vm2712, %v2697, %v2565
    %v2715 = vsel %vm2712, %v2698, %v2567
    %v2716 = vsel %vm2712, %v2699, %v2569
    %v2717 = vsel %vm2712, %v2700, %v2571
    %v2718 = vsel %vm2712, %v2701, %v2573
    %v2719 = vsel %vm2712, %v2702, %v2575
    %v2720 = vsel %vm2712, %v2703, %v2577
    %v2721 = vsel %vm2712, %v2704, %v2579
    %v2722 = vsel %vm2712, %v2705, %v2581
    %v2723 = vsel %vm2712, %v2706, %v2583
    %v2724 = vsel %vm2712, %v2707, %v2585
    %v2725 = vsel %vm2712, %v2708, %v2587
    %v2726 = vsel %vm2712, %v2709, %v2589
    %v2727 = vsel %vm2712, %v2710, %v2591
    %v2728 = vsel %vm2712, %v2711, %v2593
    %v2729 = vmul.f32 %v34, %v2713
    %v2730 = vmul.f32 %v35, %v2714
    %v2731 = vmul.f32 %v36, %v2715
    %v2732 = vmul.f32 %v37, %v2716
    %v2733 = vmul.f32 %v38, %v2717
    %v2734 = vmul.f32 %v39, %v2718
    %v2735 = vmul.f32 %v40, %v2719
    %v2736 = vmul.f32 %v41, %v2720
    %v2737 = vmul.f32 %v42, %v2721
    %v2738 = vmul.f32 %v43, %v2722
    %v2739 = vmul.f32 %v44, %v2723
    %v2740 = vmul.f32 %v45, %v2724
    %v2741 = vmul.f32 %v46, %v2725
    %v2742 = vmul.f32 %v47, %v2726
    %v2743 = vmul.f32 %v48, %v2727
    %v2744 = vmul.f32 %v49, %v2728
    %vm2745 = vcmask 130048
    %2746 = vst.msk [vmem:[#allocation5] sm:$0xff] %vm2745, %v2729
    %2747 = vst.msk [vmem:[#allocation5 + $0x8] sm:$0xff] %vm2745, %v2730
    %2748 = vst.msk [vmem:[#allocation5 + $0x10] sm:$0xff] %vm2745, %v2731
    %2749 = vst.msk [vmem:[#allocation5 + $0x18] sm:$0xff] %vm2745, %v2732
    %2750 = vst.msk [vmem:[#allocation5 + $0x20] sm:$0xff] %vm2745, %v2733
    %2751 = vst.msk [vmem:[#allocation5 + $0x28] sm:$0xff] %vm2745, %v2734
    %2752 = vst.msk [vmem:[#allocation5 + $0x30] sm:$0xff] %vm2745, %v2735
    %2753 = vst.msk [vmem:[#allocation5 + $0x38] sm:$0xff] %vm2745, %v2736
    %2754 = vst.msk [vmem:[#allocation5 + $0x40] sm:$0xff] %vm2745, %v2737
    %2755 = vst.msk [vmem:[#allocation5 + $0x48] sm:$0xff] %vm2745, %v2738
    %2756 = vst.msk [vmem:[#allocation5 + $0x50] sm:$0xff] %vm2745, %v2739
    %2757 = vst.msk [vmem:[#allocation5 + $0x58] sm:$0xff] %vm2745, %v2740
    %2758 = vst.msk [vmem:[#allocation5 + $0x60] sm:$0xff] %vm2745, %v2741
    %2759 = vst.msk [vmem:[#allocation5 + $0x68] sm:$0xff] %vm2745, %v2742
    %2760 = vst.msk [vmem:[#allocation5 + $0x70] sm:$0xff] %vm2745, %v2743
    %2761 = vst.msk [vmem:[#allocation5 + $0x78] sm:$0xff] %vm2745, %v2744
    // Predicated region
    $region14: #{tpu_custom_call.1} parent=1 // pred_check
      _
    $region15: #{tpu_custom_call.1} parent=1 // pred_check_branch
      %2763 = sbr.rel (0) target = $region17
    $region16: #{tpu_custom_call.1} parent=1 // pred_region
      %s2765 = ssub.s32 2048, 2048
      %2766 = vsyncadd [#allocation4], %s2765
      %s2767 = sshll.u32 [#allocation5], 4
      %s2768 = int_to_ptr.vmem [resolvable:$true] %s2767
      %2773 = dma.vmem_to_hbm [thread:$0]  %s2768, 2048, %s2, [#allocation4], 128, 128, 8
    $region17: #{tpu_custom_call.1} parent=1 // pred_fallthru
      _
    // Predicated region
    $region18: #{tpu_custom_call.1} parent=1 // pred_check
      _
    $region19: #{tpu_custom_call.1} parent=1 // pred_check_branch
      %2775 = sbr.rel (0) target = $region21
    $region20: #{tpu_custom_call.1} parent=1 // pred_region
      %2776 = dma.done [#allocation4], 2048
    $region21: #{tpu_custom_call.1} parent=1 // pred_fallthru
      _
    %2777 = vsyncpa [#allocation3], 1
    %2778 = vsyncpa [#allocation4], 1

</llo_original>
